<compile_context>
chip_gen: v6e
topology: v6e:2x2x1
jax: 0.10.0
libtpu: 0.0.40
codegen_flags: <defaults>
</compile_context>

<pallas_src>
import jax
import jax.numpy as jnp
from jax.experimental import pallas as pl
from jax.experimental.pallas import tpu as pltpu

# --- module hyper-parameters (from plot4pres.py) -----------------------------
COMMITMENT_COST = 0.1
LIN_ARC = [2000, 1]
RES_ARC = [12, 4]
EMBEDDING_DIM = RES_ARC[-1] * LIN_ARC[-1]   # = 4
NUM_EMBEDDINGS = 100

STRIP = 8                                   # sublane strip height (f32 vreg rows)


def _hw_tuning():
    """(lane-tile cap, vmem_limit_bytes) from the local TPU generation.

    v5e/v6e (128 MiB VMEM): big tiles amortize the ~0.35 us per-step overhead.
    v7x (64 MiB VMEM, 2 TCs): keep tiles moderate and leave VMEM headroom.
    """
    cap, vmem_limit = 4096, 48 * 1024 * 1024            # safe, v7x-friendly default
    try:
        info = pltpu.get_tpu_info()
        vmem_bytes = getattr(info, "vmem_capacity_bytes", 0) or 0
        if vmem_bytes >= 96 * 1024 * 1024:               # v5e / v6e class parts
            cap, vmem_limit = 8192, 64 * 1024 * 1024
    except Exception:
        pass
    return cap, vmem_limit


def _plan_time_tiling(T, B, cap):
    """Pick (TT, T_pad): lane tile and padded time length (multiple of TT).

    - TT is a multiple of 128 (lane-dense, unmasked vst) unless T is tiny.
    - When B == 1 force >= 2 time tiles so the all-"parallel" grid has work for
      both v7x TensorCores.
    - Never emits a single huge full-T tile: long / odd T is padded instead.
    """
    min_tiles = 1 if B >= 2 else 2
    if T <= 128 or (T <= cap and T % 128 == 0 and min_tiles == 1):
        return T, T
    target = -(-T // min_tiles)                          # ceil(T / min_tiles)
    tt = min(cap, -(-target // 128) * 128)               # multiple of 128, <= cap
    n_t = -(-T // tt)
    return tt, n_t * tt


def _make_vq_kernel(t_valid, needs_mask):
    """Kernel factory; t_valid / needs_mask are trace-time constants."""

    def kernel(neg2e_ref, esq_ref, et_ref, x_ref, quant_ref, idx_ref, sse_ref):
        # neg2e_ref: (NP, D)  = -2 * embedding (zero padded rows)      (resident)
        # esq_ref:   (NP, 1)  = ||embedding||^2 (1e30 in padded rows)  (resident)
        # et_ref:    (D, NP)  = embedding^T (zero padded cols)         (resident)
        # x_ref:     (1, D, TT) input tile, lane-dense over time
        # quant_ref: (1, D, TT) quantized output tile
        # idx_ref:   (1, 1, TT) argmin codebook indices
        # sse_ref:   (1, 1, 1, 1) per-tile sum of squared error (loss partial)
        x = x_ref[0]                                       # (D, TT) f32
        tt = x.shape[1]
        npad = neg2e_ref.shape[0]
        n_strips = npad // STRIP

        # Cross term on the MXU (K = D = 4), exact f32 so argmin matches torch.
        cross = jnp.dot(neg2e_ref[...], x,
                        preferred_element_type=jnp.float32,
                        precision=jax.lax.Precision.HIGHEST)       # (NP, TT)
        esq = esq_ref[...]                                         # (NP, 1)

        # Fused single-pass min/argmin over the codebook (sublane) axis.
        # Running (min_val, min_strip) over 8-row strips; strict '<' keeps the
        # earliest strip on ties, final index-min keeps the earliest sublane,
        # so the tie-break matches torch.argmin (first occurrence).
        sub = jax.lax.broadcasted_iota(jnp.int32, (STRIP, tt), 0)  # rows 0..7
        min_val = cross[0:STRIP, :] + esq[0:STRIP, :]              # (8, TT)
        min_strip = jnp.zeros((STRIP, tt), jnp.int32)
        for s in range(1, n_strips):
            d = cross[s * STRIP:(s + 1) * STRIP, :] + esq[s * STRIP:(s + 1) * STRIP, :]
            better = d < min_val
            min_val = jnp.where(better, d, min_val)
            min_strip = jnp.where(better, s, min_strip)
        final_min = jnp.min(min_val, axis=0, keepdims=True)        # (1, TT)
        cand_idx = min_strip * STRIP + sub                          # (8, TT)
        idx = jnp.min(jnp.where(min_val == final_min, cand_idx, npad),
                      axis=0, keepdims=True)                        # (1, TT)

        # One-hot gather on the MXU: quant^T (D,TT) = E^T (D,NP) @ onehot (NP,TT).
        row = jax.lax.broadcasted_iota(jnp.int32, (npad, tt), 0)
        onehot = (row == idx).astype(jnp.float32)
        quant = jnp.dot(et_ref[...], onehot,
                        preferred_element_type=jnp.float32,
                        precision=jax.lax.Precision.HIGHEST)        # (D, TT)

        quant_ref[0] = quant.astype(quant_ref.dtype)
        idx_ref[0] = idx

        diff = quant - x
        if needs_mask:
            # Padded time columns must not contribute to the loss.
            col = (pl.program_id(1) * tt
                   + jax.lax.broadcasted_iota(jnp.int32, (1, tt), 1))
            diff = jnp.where(col < t_valid, diff, 0.0)
        sse_ref[...] = jnp.sum(diff * diff).reshape(1, 1, 1, 1)

    return kernel


def vector_quantizer_forward(inputs, embedding):
    """inputs: (B, C=EMBEDDING_DIM, T) float32 (PyTorch NCL layout).
    embedding: (NUM_EMBEDDINGS, EMBEDDING_DIM) float32 codebook.
    Returns (quantized NCL, loss, perplexity, embedding, encoding_indices)."""
    B, C, T = inputs.shape
    N, D = embedding.shape
    assert C == D

    cap, vmem_limit = _hw_tuning()
    TT, T_pad = _plan_time_tiling(T, B, cap)
    n_t = T_pad // TT
    needs_mask = T_pad != T

    # Codebook-derived operands, padded to a multiple of 8 rows so the in-kernel
    # strip loop is aligned.  Padded rows get a huge ||e||^2 so they never win.
    NP = ((N + STRIP - 1) // STRIP) * STRIP
    emb = embedding.astype(jnp.float32)
    neg2e = jnp.zeros((NP, D), jnp.float32).at[:N, :].set(-2.0 * emb)
    esq = jnp.full((NP, 1), 1e30, jnp.float32).at[:N, :].set(
        jnp.sum(emb * emb, axis=1, keepdims=True))
    e_t = jnp.zeros((D, NP), jnp.float32).at[:, :N].set(emb.T)

    x = inputs.astype(jnp.float32)
    if needs_mask:
        x = jnp.pad(x, ((0, 0), (0, 0), (0, T_pad - T)))

    kernel = _make_vq_kernel(T, needs_mask)

    quant, idx, sse = pl.pallas_call(
        kernel,
        out_shape=(
            jax.ShapeDtypeStruct((B, C, T_pad), jnp.float32),       # quantized (NCL)
            jax.ShapeDtypeStruct((B, 1, T_pad), jnp.int32),         # indices, lane-dense
            jax.ShapeDtypeStruct((B, n_t, 1, 1), jnp.float32),      # per-tile SSE
        ),
        grid=(B, n_t),
        in_specs=[
            pl.BlockSpec((NP, D), lambda b, i: (0, 0)),             # -2E     (resident)
            pl.BlockSpec((NP, 1), lambda b, i: (0, 0)),             # ||E||^2 (resident)
            pl.BlockSpec((D, NP), lambda b, i: (0, 0)),             # E^T     (resident)
            pl.BlockSpec((1, C, TT), lambda b, i: (b, 0, i)),       # input tile
        ],
        out_specs=(
            pl.BlockSpec((1, C, TT), lambda b, i: (b, 0, i)),
            pl.BlockSpec((1, 1, TT), lambda b, i: (b, 0, i)),
            pl.BlockSpec((1, 1, 1, 1), lambda b, i: (b, i, 0, 0)),
        ),
        compiler_params=pltpu.CompilerParams(
            dimension_semantics=("parallel", "parallel"),
            vmem_limit_bytes=vmem_limit,
        ),
    )(neg2e, esq, e_t, x)

    if needs_mask:
        quant = quant[:, :, :T]
        idx = idx[:, :, :T]

    M = B * T
    # loss = q_latent_loss + commitment_cost * e_latent_loss = (1 + cc) * mse
    loss = (1.0 + COMMITMENT_COST) * jnp.sum(sse) / jnp.float32(M * D)

    # Perplexity = number of distinct codebook entries used (torch: len(unique)).
    # Tiny O(M) reduction over the kernel-emitted indices, kept in the wrapper
    # so every grid axis stays "parallel" (no cross-tile accumulator in-kernel).
    idx_flat = idx.reshape(M)
    counts = jnp.zeros((N,), jnp.int32).at[idx_flat].add(1)
    perplexity = jnp.sum((counts > 0).astype(jnp.int32))

    encoding_indices = idx_flat.reshape(M, 1)   # same (b*T + t) row order as torch
    return quant, loss, perplexity, embedding, encoding_indices


def _reference(inputs, embedding):
    """Pure-JAX reference mirroring the torch forward (for sanity checking)."""
    B, C, T = inputs.shape
    flat = jnp.transpose(inputs, (0, 2, 1)).reshape(-1, C)
    cross = jax.lax.dot_general(flat, embedding.T, (((1,), (0,)), ((), ())),
                                precision=jax.lax.Precision.HIGHEST)
    dist = (jnp.sum(flat ** 2, axis=1, keepdims=True)
            + jnp.sum(embedding ** 2, axis=1) - 2.0 * cross)
    idx = jnp.argmin(dist, axis=1)
    quant = embedding[idx]
    loss = (1.0 + COMMITMENT_COST) * jnp.mean((quant - flat) ** 2)
    counts = jnp.zeros((embedding.shape[0],), jnp.int32).at[idx].add(1)
    perp = jnp.sum(counts > 0)
    quantized = jnp.transpose(quant.reshape(B, T, C), (0, 2, 1))
    return quantized, loss, perp, idx


if __name__ == "__main__":
    key = jax.random.PRNGKey(0)
    k_emb, k_in = jax.random.split(key)

    # deterministic codebook init: uniform(-1/N, 1/N), like the torch module
    embedding = jax.random.uniform(
        k_emb, (NUM_EMBEDDINGS, EMBEDDING_DIM),
        minval=-1.0 / NUM_EMBEDDINGS, maxval=1.0 / NUM_EMBEDDINGS,
        dtype=jnp.float32)

    # small example input: batch=2, channels=embedding_dim=4, length=16 (NCL)
    B, C, T = 2, EMBEDDING_DIM, 16
    x = jax.random.normal(k_in, (B, C, T), dtype=jnp.float32) * 0.05

    quantized, loss, perplexity, emb_out, indices = jax.block_until_ready(
        vector_quantizer_forward(x, embedding))

    # sanity check against pure-JAX reference
    q_ref, loss_ref, perp_ref, idx_ref = _reference(x, embedding)
    assert quantized.shape == (B, C, T)
    assert indices.shape == (B * T, 1)
    assert jnp.allclose(quantized, q_ref, atol=1e-6)
    assert jnp.allclose(loss, loss_ref, atol=1e-6)
    assert jnp.all(indices[:, 0] == idx_ref)
    assert int(perplexity) == int(perp_ref)

    print("KERNEL_OK")
</pallas_src>

<mosaic_0001>
module attributes {stable_mosaic.version = 11 : i64} {
  func.func @kernel(%arg0: i32, %arg1: i32, %arg2: memref<104x4xf32, #tpu.memory_space<vmem>>, %arg3: memref<104x1xf32, #tpu.memory_space<vmem>>, %arg4: memref<4x104xf32, #tpu.memory_space<vmem>>, %arg5: memref<1x4x16xf32, #tpu.memory_space<vmem>>, %arg6: memref<1x4x16xf32, #tpu.memory_space<vmem>>, %arg7: memref<1x1x16xi32, #tpu.memory_space<vmem>>, %arg8: memref<1x1x1x1xf32, #tpu.memory_space<vmem>>) attributes {dimension_semantics = [#tpu.dimension_semantics<parallel>, #tpu.dimension_semantics<parallel>], iteration_bounds = array<i64: 2, 1>, scalar_prefetch = 0 : i64, scratch_operands = 0 : i64, tpu.core_type = #tpu.core_type<tc>, window_params = [{pipeline_mode = #tpu.pipeline_mode<synchronous>, transform_indices = @transform_0, window_bounds = array<i64: 104, 4>}, {pipeline_mode = #tpu.pipeline_mode<synchronous>, transform_indices = @transform_1, window_bounds = array<i64: 104, 1>}, {pipeline_mode = #tpu.pipeline_mode<synchronous>, transform_indices = @transform_2, window_bounds = array<i64: 4, 104>}, {transform_indices = @transform_3, window_bounds = array<i64: 1, 4, 16>}, {transform_indices = @transform_4, window_bounds = array<i64: 1, 4, 16>}, {transform_indices = @transform_5, window_bounds = array<i64: 1, 1, 16>}, {transform_indices = @transform_6, window_bounds = array<i64: 1, 1, 1, 1>}]} {
    %c0 = arith.constant 0 : index
    %c0_0 = arith.constant 0 : index
    %c0_1 = arith.constant 0 : index
    %0 = vector.load %arg5[%c0, %c0_0, %c0_1] : memref<1x4x16xf32, #tpu.memory_space<vmem>>, vector<1x4x16xf32>
    %1 = vector.shape_cast %0 : vector<1x4x16xf32> to vector<4x16xf32>
    %c0_2 = arith.constant 0 : index
    %c0_3 = arith.constant 0 : index
    %2 = vector.load %arg2[%c0_2, %c0_3] : memref<104x4xf32, #tpu.memory_space<vmem>>, vector<104x4xf32>
    %cst = arith.constant dense<0.000000e+00> : vector<104x16xf32>
    %3 = tpu.matmul %2, %1, %cst {dimension_numbers = #tpu.dot_dimension_numbers<[1], [0], [0], [1], [0, 0, 1, 1], [], []>, precision = #tpu.contract_precision<fp32>} : vector<104x4xf32>, vector<4x16xf32>, vector<104x16xf32> -> vector<104x16xf32>
    %c0_4 = arith.constant 0 : index
    %c0_5 = arith.constant 0 : index
    %4 = vector.load %arg3[%c0_4, %c0_5] : memref<104x1xf32, #tpu.memory_space<vmem>>, vector<104x1xf32>
    %5 = tpu.iota {dimensions = array<i32: 0>} : vector<8x16xi32>
    %6 = vector.extract_strided_slice %3 {offsets = [0, 0], sizes = [8, 16], strides = [1, 1]} : vector<104x16xf32> to vector<8x16xf32>
    %7 = vector.extract_strided_slice %4 {offsets = [0, 0], sizes = [8, 1], strides = [1, 1]} : vector<104x1xf32> to vector<8x1xf32>
    %8 = vector.broadcast %7 : vector<8x1xf32> to vector<8x16xf32>
    %9 = arith.addf %6, %8 : vector<8x16xf32>
    %c0_i32 = arith.constant 0 : i32
    %10 = vector.broadcast %c0_i32 : i32 to vector<8x16xi32>
    %11 = vector.extract_strided_slice %3 {offsets = [8, 0], sizes = [8, 16], strides = [1, 1]} : vector<104x16xf32> to vector<8x16xf32>
    %12 = vector.extract_strided_slice %4 {offsets = [8, 0], sizes = [8, 1], strides = [1, 1]} : vector<104x1xf32> to vector<8x1xf32>
    %13 = vector.broadcast %12 : vector<8x1xf32> to vector<8x16xf32>
    %14 = arith.addf %11, %13 : vector<8x16xf32>
    %15 = arith.cmpf olt, %14, %9 : vector<8x16xf32>
    %16 = arith.select %15, %14, %9 : vector<8x16xi1>, vector<8x16xf32>
    %c1_i32 = arith.constant 1 : i32
    %17 = vector.broadcast %c1_i32 : i32 to vector<8x16xi32>
    %18 = arith.select %15, %17, %10 : vector<8x16xi1>, vector<8x16xi32>
    %19 = vector.extract_strided_slice %3 {offsets = [16, 0], sizes = [8, 16], strides = [1, 1]} : vector<104x16xf32> to vector<8x16xf32>
    %20 = vector.extract_strided_slice %4 {offsets = [16, 0], sizes = [8, 1], strides = [1, 1]} : vector<104x1xf32> to vector<8x1xf32>
    %21 = vector.broadcast %20 : vector<8x1xf32> to vector<8x16xf32>
    %22 = arith.addf %19, %21 : vector<8x16xf32>
    %23 = arith.cmpf olt, %22, %16 : vector<8x16xf32>
    %24 = arith.select %23, %22, %16 : vector<8x16xi1>, vector<8x16xf32>
    %c2_i32 = arith.constant 2 : i32
    %25 = vector.broadcast %c2_i32 : i32 to vector<8x16xi32>
    %26 = arith.select %23, %25, %18 : vector<8x16xi1>, vector<8x16xi32>
    %27 = vector.extract_strided_slice %3 {offsets = [24, 0], sizes = [8, 16], strides = [1, 1]} : vector<104x16xf32> to vector<8x16xf32>
    %28 = vector.extract_strided_slice %4 {offsets = [24, 0], sizes = [8, 1], strides = [1, 1]} : vector<104x1xf32> to vector<8x1xf32>
    %29 = vector.broadcast %28 : vector<8x1xf32> to vector<8x16xf32>
    %30 = arith.addf %27, %29 : vector<8x16xf32>
    %31 = arith.cmpf olt, %30, %24 : vector<8x16xf32>
    %32 = arith.select %31, %30, %24 : vector<8x16xi1>, vector<8x16xf32>
    %c3_i32 = arith.constant 3 : i32
    %33 = vector.broadcast %c3_i32 : i32 to vector<8x16xi32>
    %34 = arith.select %31, %33, %26 : vector<8x16xi1>, vector<8x16xi32>
    %35 = vector.extract_strided_slice %3 {offsets = [32, 0], sizes = [8, 16], strides = [1, 1]} : vector<104x16xf32> to vector<8x16xf32>
    %36 = vector.extract_strided_slice %4 {offsets = [32, 0], sizes = [8, 1], strides = [1, 1]} : vector<104x1xf32> to vector<8x1xf32>
    %37 = vector.broadcast %36 : vector<8x1xf32> to vector<8x16xf32>
    %38 = arith.addf %35, %37 : vector<8x16xf32>
    %39 = arith.cmpf olt, %38, %32 : vector<8x16xf32>
    %40 = arith.select %39, %38, %32 : vector<8x16xi1>, vector<8x16xf32>
    %c4_i32 = arith.constant 4 : i32
    %41 = vector.broadcast %c4_i32 : i32 to vector<8x16xi32>
    %42 = arith.select %39, %41, %34 : vector<8x16xi1>, vector<8x16xi32>
    %43 = vector.extract_strided_slice %3 {offsets = [40, 0], sizes = [8, 16], strides = [1, 1]} : vector<104x16xf32> to vector<8x16xf32>
    %44 = vector.extract_strided_slice %4 {offsets = [40, 0], sizes = [8, 1], strides = [1, 1]} : vector<104x1xf32> to vector<8x1xf32>
    %45 = vector.broadcast %44 : vector<8x1xf32> to vector<8x16xf32>
    %46 = arith.addf %43, %45 : vector<8x16xf32>
    %47 = arith.cmpf olt, %46, %40 : vector<8x16xf32>
    %48 = arith.select %47, %46, %40 : vector<8x16xi1>, vector<8x16xf32>
    %c5_i32 = arith.constant 5 : i32
    %49 = vector.broadcast %c5_i32 : i32 to vector<8x16xi32>
    %50 = arith.select %47, %49, %42 : vector<8x16xi1>, vector<8x16xi32>
    %51 = vector.extract_strided_slice %3 {offsets = [48, 0], sizes = [8, 16], strides = [1, 1]} : vector<104x16xf32> to vector<8x16xf32>
    %52 = vector.extract_strided_slice %4 {offsets = [48, 0], sizes = [8, 1], strides = [1, 1]} : vector<104x1xf32> to vector<8x1xf32>
    %53 = vector.broadcast %52 : vector<8x1xf32> to vector<8x16xf32>
    %54 = arith.addf %51, %53 : vector<8x16xf32>
    %55 = arith.cmpf olt, %54, %48 : vector<8x16xf32>
    %56 = arith.select %55, %54, %48 : vector<8x16xi1>, vector<8x16xf32>
    %c6_i32 = arith.constant 6 : i32
    %57 = vector.broadcast %c6_i32 : i32 to vector<8x16xi32>
    %58 = arith.select %55, %57, %50 : vector<8x16xi1>, vector<8x16xi32>
    %59 = vector.extract_strided_slice %3 {offsets = [56, 0], sizes = [8, 16], strides = [1, 1]} : vector<104x16xf32> to vector<8x16xf32>
    %60 = vector.extract_strided_slice %4 {offsets = [56, 0], sizes = [8, 1], strides = [1, 1]} : vector<104x1xf32> to vector<8x1xf32>
    %61 = vector.broadcast %60 : vector<8x1xf32> to vector<8x16xf32>
    %62 = arith.addf %59, %61 : vector<8x16xf32>
    %63 = arith.cmpf olt, %62, %56 : vector<8x16xf32>
    %64 = arith.select %63, %62, %56 : vector<8x16xi1>, vector<8x16xf32>
    %c7_i32 = arith.constant 7 : i32
    %65 = vector.broadcast %c7_i32 : i32 to vector<8x16xi32>
    %66 = arith.select %63, %65, %58 : vector<8x16xi1>, vector<8x16xi32>
    %67 = vector.extract_strided_slice %3 {offsets = [64, 0], sizes = [8, 16], strides = [1, 1]} : vector<104x16xf32> to vector<8x16xf32>
    %68 = vector.extract_strided_slice %4 {offsets = [64, 0], sizes = [8, 1], strides = [1, 1]} : vector<104x1xf32> to vector<8x1xf32>
    %69 = vector.broadcast %68 : vector<8x1xf32> to vector<8x16xf32>
    %70 = arith.addf %67, %69 : vector<8x16xf32>
    %71 = arith.cmpf olt, %70, %64 : vector<8x16xf32>
    %72 = arith.select %71, %70, %64 : vector<8x16xi1>, vector<8x16xf32>
    %c8_i32 = arith.constant 8 : i32
    %73 = vector.broadcast %c8_i32 : i32 to vector<8x16xi32>
    %74 = arith.select %71, %73, %66 : vector<8x16xi1>, vector<8x16xi32>
    %75 = vector.extract_strided_slice %3 {offsets = [72, 0], sizes = [8, 16], strides = [1, 1]} : vector<104x16xf32> to vector<8x16xf32>
    %76 = vector.extract_strided_slice %4 {offsets = [72, 0], sizes = [8, 1], strides = [1, 1]} : vector<104x1xf32> to vector<8x1xf32>
    %77 = vector.broadcast %76 : vector<8x1xf32> to vector<8x16xf32>
    %78 = arith.addf %75, %77 : vector<8x16xf32>
    %79 = arith.cmpf olt, %78, %72 : vector<8x16xf32>
    %80 = arith.select %79, %78, %72 : vector<8x16xi1>, vector<8x16xf32>
    %c9_i32 = arith.constant 9 : i32
    %81 = vector.broadcast %c9_i32 : i32 to vector<8x16xi32>
    %82 = arith.select %79, %81, %74 : vector<8x16xi1>, vector<8x16xi32>
    %83 = vector.extract_strided_slice %3 {offsets = [80, 0], sizes = [8, 16], strides = [1, 1]} : vector<104x16xf32> to vector<8x16xf32>
    %84 = vector.extract_strided_slice %4 {offsets = [80, 0], sizes = [8, 1], strides = [1, 1]} : vector<104x1xf32> to vector<8x1xf32>
    %85 = vector.broadcast %84 : vector<8x1xf32> to vector<8x16xf32>
    %86 = arith.addf %83, %85 : vector<8x16xf32>
    %87 = arith.cmpf olt, %86, %80 : vector<8x16xf32>
    %88 = arith.select %87, %86, %80 : vector<8x16xi1>, vector<8x16xf32>
    %c10_i32 = arith.constant 10 : i32
    %89 = vector.broadcast %c10_i32 : i32 to vector<8x16xi32>
    %90 = arith.select %87, %89, %82 : vector<8x16xi1>, vector<8x16xi32>
    %91 = vector.extract_strided_slice %3 {offsets = [88, 0], sizes = [8, 16], strides = [1, 1]} : vector<104x16xf32> to vector<8x16xf32>
    %92 = vector.extract_strided_slice %4 {offsets = [88, 0], sizes = [8, 1], strides = [1, 1]} : vector<104x1xf32> to vector<8x1xf32>
    %93 = vector.broadcast %92 : vector<8x1xf32> to vector<8x16xf32>
    %94 = arith.addf %91, %93 : vector<8x16xf32>
    %95 = arith.cmpf olt, %94, %88 : vector<8x16xf32>
    %96 = arith.select %95, %94, %88 : vector<8x16xi1>, vector<8x16xf32>
    %c11_i32 = arith.constant 11 : i32
    %97 = vector.broadcast %c11_i32 : i32 to vector<8x16xi32>
    %98 = arith.select %95, %97, %90 : vector<8x16xi1>, vector<8x16xi32>
    %99 = vector.extract_strided_slice %3 {offsets = [96, 0], sizes = [8, 16], strides = [1, 1]} : vector<104x16xf32> to vector<8x16xf32>
    %100 = vector.extract_strided_slice %4 {offsets = [96, 0], sizes = [8, 1], strides = [1, 1]} : vector<104x1xf32> to vector<8x1xf32>
    %101 = vector.broadcast %100 : vector<8x1xf32> to vector<8x16xf32>
    %102 = arith.addf %99, %101 : vector<8x16xf32>
    %103 = arith.cmpf olt, %102, %96 : vector<8x16xf32>
    %104 = arith.select %103, %102, %96 : vector<8x16xi1>, vector<8x16xf32>
    %c12_i32 = arith.constant 12 : i32
    %105 = vector.broadcast %c12_i32 : i32 to vector<8x16xi32>
    %106 = arith.select %103, %105, %98 : vector<8x16xi1>, vector<8x16xi32>
    %cst_6 = arith.constant dense<0x7F800000> : vector<16xf32>
    %107 = vector.multi_reduction <minimumf>, %104, %cst_6 [0] : vector<8x16xf32> to vector<16xf32>
    %108 = vector.shape_cast %107 : vector<16xf32> to vector<1x16xf32>
    %c8_i32_7 = arith.constant 8 : i32
    %109 = vector.broadcast %c8_i32_7 : i32 to vector<8x16xi32>
    %110 = arith.muli %106, %109 : vector<8x16xi32>
    %111 = arith.addi %110, %5 : vector<8x16xi32>
    %112 = vector.broadcast %108 : vector<1x16xf32> to vector<8x16xf32>
    %113 = arith.cmpf oeq, %104, %112 : vector<8x16xf32>
    %c104_i32 = arith.constant 104 : i32
    %114 = vector.broadcast %c104_i32 : i32 to vector<8x16xi32>
    %115 = arith.select %113, %111, %114 : vector<8x16xi1>, vector<8x16xi32>
    %cst_8 = arith.constant dense<2147483647> : vector<16xi32>
    %116 = vector.multi_reduction <minsi>, %115, %cst_8 [0] : vector<8x16xi32> to vector<16xi32>
    %117 = vector.shape_cast %116 : vector<16xi32> to vector<1x16xi32>
    %118 = tpu.iota {dimensions = array<i32: 0>} : vector<104x16xi32>
    %119 = vector.broadcast %117 : vector<1x16xi32> to vector<104x16xi32>
    %120 = arith.cmpi eq, %118, %119 : vector<104x16xi32>
    %121 = arith.extui %120 : vector<104x16xi1> to vector<104x16xi32>
    %122 = arith.sitofp %121 : vector<104x16xi32> to vector<104x16xf32>
    %c0_9 = arith.constant 0 : index
    %c0_10 = arith.constant 0 : index
    %123 = vector.load %arg4[%c0_9, %c0_10] : memref<4x104xf32, #tpu.memory_space<vmem>>, vector<4x104xf32>
    %cst_11 = arith.constant dense<0.000000e+00> : vector<4x16xf32>
    %124 = tpu.matmul %123, %122, %cst_11 {dimension_numbers = #tpu.dot_dimension_numbers<[1], [0], [0], [1], [0, 0, 1, 1], [], []>, precision = #tpu.contract_precision<fp32>} : vector<4x104xf32>, vector<104x16xf32>, vector<4x16xf32> -> vector<4x16xf32>
    %c0_12 = arith.constant 0 : index
    %c0_13 = arith.constant 0 : index
    %c0_14 = arith.constant 0 : index
    %125 = vector.load %arg6[%c0_12, %c0_13, %c0_14] : memref<1x4x16xf32, #tpu.memory_space<vmem>>, vector<1x4x16xf32>
    %126 = vector.shape_cast %125 : vector<1x4x16xf32> to vector<4x16xf32>
    %127 = vector.shape_cast %124 : vector<4x16xf32> to vector<1x4x16xf32>
    tpu.vector_store %arg6[%c0_12, %c0_13, %c0_14], %127 {strides = array<i32>} : memref<1x4x16xf32, #tpu.memory_space<vmem>>, vector<1x4x16xf32>,
    %c0_15 = arith.constant 0 : index
    %c0_16 = arith.constant 0 : index
    %c0_17 = arith.constant 0 : index
    %128 = vector.load %arg7[%c0_15, %c0_16, %c0_17] : memref<1x1x16xi32, #tpu.memory_space<vmem>>, vector<1x1x16xi32>
    %129 = vector.shape_cast %128 : vector<1x1x16xi32> to vector<1x16xi32>
    %130 = vector.shape_cast %117 : vector<1x16xi32> to vector<1x1x16xi32>
    tpu.vector_store %arg7[%c0_15, %c0_16, %c0_17], %130 {strides = array<i32>} : memref<1x1x16xi32, #tpu.memory_space<vmem>>, vector<1x1x16xi32>,
    %131 = arith.subf %124, %1 : vector<4x16xf32>
    %132 = arith.mulf %131, %131 : vector<4x16xf32>
    %133 = vector.shape_cast %132 : vector<4x16xf32> to vector<1x4x16xf32>
    %cst_18 = arith.constant dense<0.000000e+00> : vector<1xf32>
    %134 = vector.multi_reduction <add>, %133, %cst_18 [1, 2] : vector<1x4x16xf32> to vector<1xf32>
    %135 = vector.shape_cast %134 : vector<1xf32> to vector<1x1x1xf32>
    %136 = vector.extract %135[0, 0, 0] : f32 from vector<1x1x1xf32>
    %137 = vector.broadcast %136 : f32 to vector<1x1x1x1xf32>
    %c0_19 = arith.constant 0 : index
    %c0_20 = arith.constant 0 : index
    %c0_21 = arith.constant 0 : index
    %c0_22 = arith.constant 0 : index
    %138 = vector.load %arg8[%c0_19, %c0_20, %c0_21, %c0_22] : memref<1x1x1x1xf32, #tpu.memory_space<vmem>>, vector<1x1x1x1xf32>
    tpu.vector_store %arg8[%c0_19, %c0_20, %c0_21, %c0_22], %137 {strides = array<i32>} : memref<1x1x1x1xf32, #tpu.memory_space<vmem>>, vector<1x1x1x1xf32>,
    return
  }
  func.func @transform_0(%arg0: i32, %arg1: i32) -> (i32, i32) {
    %c0_i32 = arith.constant 0 : i32
    %c0_i32_0 = arith.constant 0 : i32
    %c0_i32_1 = arith.constant 0 : i32
    return %c0_i32, %c0_i32_0 : i32, i32
  }
  func.func @transform_1(%arg0: i32, %arg1: i32) -> (i32, i32) {
    %c0_i32 = arith.constant 0 : i32
    %c0_i32_0 = arith.constant 0 : i32
    %c0_i32_1 = arith.constant 0 : i32
    return %c0_i32, %c0_i32_0 : i32, i32
  }
  func.func @transform_2(%arg0: i32, %arg1: i32) -> (i32, i32) {
    %c0_i32 = arith.constant 0 : i32
    %c0_i32_0 = arith.constant 0 : i32
    %c0_i32_1 = arith.constant 0 : i32
    return %c0_i32, %c0_i32_0 : i32, i32
  }
  func.func @transform_3(%arg0: i32, %arg1: i32) -> (i32, i32, i32) {
    %c0_i32 = arith.constant 0 : i32
    %c0_i32_0 = arith.constant 0 : i32
    return %arg0, %c0_i32, %arg1 : i32, i32, i32
  }
  func.func @transform_4(%arg0: i32, %arg1: i32) -> (i32, i32, i32) {
    %c0_i32 = arith.constant 0 : i32
    %c0_i32_0 = arith.constant 0 : i32
    return %arg0, %c0_i32, %arg1 : i32, i32, i32
  }
  func.func @transform_5(%arg0: i32, %arg1: i32) -> (i32, i32, i32) {
    %c0_i32 = arith.constant 0 : i32
    %c0_i32_0 = arith.constant 0 : i32
    return %arg0, %c0_i32, %arg1 : i32, i32, i32
  }
  func.func @transform_6(%arg0: i32, %arg1: i32) -> (i32, i32, i32, i32) {
    %c0_i32 = arith.constant 0 : i32
    %c0_i32_0 = arith.constant 0 : i32
    %c0_i32_1 = arith.constant 0 : i32
    return %arg0, %arg1, %c0_i32, %c0_i32_0 : i32, i32, i32, i32
  }
}

</mosaic_0001>

<llo_original>
// kernel: tpu_custom_call.1
$region0: #{tpu_custom_call.1}
  #allocation0 [shape = 'u32[]', space=smem, size = 0x4, offset = 0x4, fixed_abs, tag = 'smem constant byte address 0x4 - core index']
  #allocation1 [shape = 'u32[144,128]{1,0:T(1,128)}', space=vmem, size = 0x12000, scoped, tag = 'internal scratch']
  %s0 = inlined_call_operand.vmem [shape: f32[104,4], index: 0, kind: input, shape index: {}]
  %s1 = inlined_call_operand.vmem [shape: f32[104,1], index: 1, kind: input, shape index: {}]
  %s2 = inlined_call_operand.vmem [shape: f32[4,104], index: 2, kind: input, shape index: {}]
  %s3 = inlined_call_operand.vmem [shape: f32[2,4,16], index: 3, kind: input, shape index: {}]
  %s4 = inlined_call_operand.hbm [shape: f32[2,4,16], index: 4, kind: output, shape index: {0}]
  %s5 = inlined_call_operand.hbm [shape: s32[2,1,16], index: 5, kind: output, shape index: {1}]
  %s6 = inlined_call_operand.vmem [shape: f32[2,1,1,1], index: 6, kind: output, shape index: {2}]
  %7 = xla_tuple %s4, %s5, %s6
  %s8 = sld [smem:[#allocation0]]
  $region65: #{tpu_custom_call.1} parent=0
    _
  %s10 = ssub.s32 1, %s8
  %s11 = scalar_select 0, %s10, %s8
  $region1: #{tpu_custom_call.1} parent=0
    #allocation2 [shape = 'u8[4096]{0}', space=vmem, size = 0x1000, scoped, tag = 'output window, operand 0']
    #allocation3 [shape = 's32[2]{0}', space=sflag, size = 0x8, scoped, tag = 'scoped memory for tpu_custom_call.1']
    #allocation4 [shape = 'u8[1024]{0}', space=vmem, size = 0x400, scoped, tag = 'output window, operand 1']
    #allocation5 [shape = 's32[2]{0}', space=sflag, size = 0x8, scoped, tag = 'scoped memory for tpu_custom_call.1']
    %12 = vsyncpa [#allocation3], 0
    %s13 = scalar_lea.sflag [#allocation3], 1
    %14 = vsyncpa %s13, 0
    %15 = vsyncpa [#allocation5], 0
    %s16 = scalar_lea.sflag [#allocation5], 1
    %17 = vsyncpa %s16, 0
    loop: start=0, step=1, limit=4
    $region2: #{tpu_custom_call.1} parent=1 // loop_pre_header
      _
    $region3: #{tpu_custom_call.1} parent=1 // loop_header
      %s19 = sphi 0, %s23
      %p20 = scmp.ge.s32.totalorder %s19, 4
      %s26 = sphi 0, %s38
      %s27 = sphi 0, %s34
      %s28 = sphi 0, %s26
      %s29 = sphi 0, %s27
      %s30 = sphi 0, %s28
      %s31 = sphi 0, %s29
      %s39 = sphi 0, %s39
      %s41 = sphi 0, %s39
      %s42 = sphi 0, %s41
      %s56 = sphi 0, %s42
      %s60 = sphi 0, %s60
      %s62 = sphi 0, %s60
      %s63 = sphi 0, %s62
      %s77 = sphi 0, %s63
      %s81 = sphi 0, %s81
      %s83 = sphi 0, %s81
      %s84 = sphi 0, %s83
      %s98 = sphi 0, %s84
      %s106 = sphi 0, %s108
      %s109 = sphi 0, %s106
      %s110 = sphi 0, %s109
      %s126 = sphi 0, %s110
      %s134 = sphi 0, %s136
      %s137 = sphi 0, %s134
      %s138 = sphi 0, %s137
      %s154 = sphi 0, %s138
      %s162 = sphi 0, %s164
      %s165 = sphi 0, %s162
      %s166 = sphi 0, %s165
      %s182 = sphi 0, %s166
      %s190 = sphi 0, %s192
      %s193 = sphi 0, %s190
      %s194 = sphi 0, %s193
      %s210 = sphi 0, %s194
    $region4: #{tpu_custom_call.1} parent=1 // loop_header_branch
      %22 = sbr.rel (%p20) target = $region8
    $region5: #{tpu_custom_call.1} parent=1 // loop_body
      %s24 = ssub.s32 %s19, 1
      %s25 = ssub.s32 %s19, 2
      %s32 = sadd.s32 1, %s27
      %p33 = scmp.ge.s32.totalorder %s32, 1
      %s34 = scalar_select %p33, 0, %s32
      %s35 = sadd.s32 1, %s26
      %s36 = scalar_select %p33, %s35, %s26
      %p37 = scmp.ge.s32.totalorder %s36, 2
      %s38 = scalar_select %p37, 0, %s36
      %s40 = sadd.s32 %s39, 1
      %p43 = scmp.eq.s32.totalorder %s19, 1
      %p44 = scmp.ne.s32.totalorder %s39, %s41
      %p45 = scmp.eq.s32.totalorder %s19, 0
      %p46 = por %p44, %p45
      %p47 = scmp.ne.s32.totalorder %s39, %s41
      %p48 = scmp.eq.s32.totalorder %s24, 1
      %p49 = por %p47, %p48
      %p50 = scmp.ne.s32.totalorder %s41, %s42
      %p51 = scmp.eq.s32.totalorder %s24, 0
      %p52 = por %p50, %p51
      %p53 = scmp.ne.s32.totalorder %s41, %s42
      %p54 = scmp.eq.s32.totalorder %s25, 1
      %p55 = por %p53, %p54
      %p57 = scmp.ne.s32.totalorder %s42, %s56
      %p58 = scmp.eq.s32.totalorder %s25, 0
      %p59 = por %p57, %p58
      %s61 = sadd.s32 %s60, 1
      %p64 = scmp.eq.s32.totalorder %s19, 1
      %p65 = scmp.ne.s32.totalorder %s60, %s62
      %p66 = scmp.eq.s32.totalorder %s19, 0
      %p67 = por %p65, %p66
      %p68 = scmp.ne.s32.totalorder %s60, %s62
      %p69 = scmp.eq.s32.totalorder %s24, 1
      %p70 = por %p68, %p69
      %p71 = scmp.ne.s32.totalorder %s62, %s63
      %p72 = scmp.eq.s32.totalorder %s24, 0
      %p73 = por %p71, %p72
      %p74 = scmp.ne.s32.totalorder %s62, %s63
      %p75 = scmp.eq.s32.totalorder %s25, 1
      %p76 = por %p74, %p75
      %p78 = scmp.ne.s32.totalorder %s63, %s77
      %p79 = scmp.eq.s32.totalorder %s25, 0
      %p80 = por %p78, %p79
      %s82 = sadd.s32 %s81, 1
      %p85 = scmp.eq.s32.totalorder %s19, 1
      %p86 = scmp.ne.s32.totalorder %s81, %s83
      %p87 = scmp.eq.s32.totalorder %s19, 0
      %p88 = por %p86, %p87
      %p89 = scmp.ne.s32.totalorder %s81, %s83
      %p90 = scmp.eq.s32.totalorder %s24, 1
      %p91 = por %p89, %p90
      %p92 = scmp.ne.s32.totalorder %s83, %s84
      %p93 = scmp.eq.s32.totalorder %s24, 0
      %p94 = por %p92, %p93
      %p95 = scmp.ne.s32.totalorder %s83, %s84
      %p96 = scmp.eq.s32.totalorder %s25, 1
      %p97 = por %p95, %p96
      %p99 = scmp.ne.s32.totalorder %s84, %s98
      %p100 = scmp.eq.s32.totalorder %s25, 0
      %p101 = por %p99, %p100
      %s102 = ssub.s32 %s26, %s38
      %s103 = ssub.s32 %s27, %s34
      %s104 = sor.u32 %s102, %s103
      %p105 = scmp.eq.s32.totalorder %s104, 0
      %s107 = sadd.s32 %s106, 1
      %s108 = scalar_select %p105, %s106, %s107
      %p111 = pneg %p105
      %p112 = scmp.eq.s32.totalorder %s19, 1
      %p113 = por %p111, %p112
      %p114 = scmp.ne.s32.totalorder %s106, %s109
      %p115 = scmp.eq.s32.totalorder %s19, 0
      %p116 = por %p114, %p115
      %p117 = scmp.ne.s32.totalorder %s106, %s109
      %p118 = scmp.eq.s32.totalorder %s24, 1
      %p119 = por %p117, %p118
      %p120 = scmp.ne.s32.totalorder %s109, %s110
      %p121 = scmp.eq.s32.totalorder %s24, 0
      %p122 = por %p120, %p121
      %p123 = scmp.ne.s32.totalorder %s109, %s110
      %p124 = scmp.eq.s32.totalorder %s25, 1
      %p125 = por %p123, %p124
      %p127 = scmp.ne.s32.totalorder %s110, %s126
      %p128 = scmp.eq.s32.totalorder %s25, 0
      %p129 = por %p127, %p128
      %s130 = ssub.s32 %s26, %s38
      %s131 = ssub.s32 %s27, %s34
      %s132 = sor.u32 %s130, %s131
      %p133 = scmp.eq.s32.totalorder %s132, 0
      %s135 = sadd.s32 %s134, 1
      %s136 = scalar_select %p133, %s134, %s135
      %p139 = pneg %p133
      %p140 = scmp.eq.s32.totalorder %s19, 1
      %p141 = por %p139, %p140
      %p142 = scmp.ne.s32.totalorder %s134, %s137
      %p143 = scmp.eq.s32.totalorder %s19, 0
      %p144 = por %p142, %p143
      %p145 = scmp.ne.s32.totalorder %s134, %s137
      %p146 = scmp.eq.s32.totalorder %s24, 1
      %p147 = por %p145, %p146
      %p148 = scmp.ne.s32.totalorder %s137, %s138
      %p149 = scmp.eq.s32.totalorder %s24, 0
      %p150 = por %p148, %p149
      %p151 = scmp.ne.s32.totalorder %s137, %s138
      %p152 = scmp.eq.s32.totalorder %s25, 1
      %p153 = por %p151, %p152
      %p155 = scmp.ne.s32.totalorder %s138, %s154
      %p156 = scmp.eq.s32.totalorder %s25, 0
      %p157 = por %p155, %p156
      %s158 = ssub.s32 %s26, %s38
      %s159 = ssub.s32 %s27, %s34
      %s160 = sor.u32 %s158, %s159
      %p161 = scmp.eq.s32.totalorder %s160, 0
      %s163 = sadd.s32 %s162, 1
      %s164 = scalar_select %p161, %s162, %s163
      %p167 = pneg %p161
      %p168 = scmp.eq.s32.totalorder %s19, 1
      %p169 = por %p167, %p168
      %p170 = scmp.ne.s32.totalorder %s162, %s165
      %p171 = scmp.eq.s32.totalorder %s19, 0
      %p172 = por %p170, %p171
      %p173 = scmp.ne.s32.totalorder %s162, %s165
      %p174 = scmp.eq.s32.totalorder %s24, 1
      %p175 = por %p173, %p174
      %p176 = scmp.ne.s32.totalorder %s165, %s166
      %p177 = scmp.eq.s32.totalorder %s24, 0
      %p178 = por %p176, %p177
      %p179 = scmp.ne.s32.totalorder %s165, %s166
      %p180 = scmp.eq.s32.totalorder %s25, 1
      %p181 = por %p179, %p180
      %p183 = scmp.ne.s32.totalorder %s166, %s182
      %p184 = scmp.eq.s32.totalorder %s25, 0
      %p185 = por %p183, %p184
      %s186 = ssub.s32 %s26, %s38
      %s187 = ssub.s32 %s27, %s34
      %s188 = sor.u32 %s186, %s187
      %p189 = scmp.eq.s32.totalorder %s188, 0
      %s191 = sadd.s32 %s190, 1
      %s192 = scalar_select %p189, %s190, %s191
      %p195 = pneg %p189
      %p196 = scmp.eq.s32.totalorder %s19, 1
      %p197 = por %p195, %p196
      %p198 = scmp.ne.s32.totalorder %s190, %s193
      %p199 = scmp.eq.s32.totalorder %s19, 0
      %p200 = por %p198, %p199
      %p201 = scmp.ne.s32.totalorder %s190, %s193
      %p202 = scmp.eq.s32.totalorder %s24, 1
      %p203 = por %p201, %p202
      %p204 = scmp.ne.s32.totalorder %s193, %s194
      %p205 = scmp.eq.s32.totalorder %s24, 0
      %p206 = por %p204, %p205
      %p207 = scmp.ne.s32.totalorder %s193, %s194
      %p208 = scmp.eq.s32.totalorder %s25, 1
      %p209 = por %p207, %p208
      %p211 = scmp.ne.s32.totalorder %s194, %s210
      %p212 = scmp.eq.s32.totalorder %s25, 0
      %p213 = por %p211, %p212
      %p214 = scmp.le.s32.totalorder 1, %s19
      %p215 = scmp.lt.s32.totalorder %s19, 3
      %p216 = pnand %p214, %p215
      %p217 = pneg %p216
      // Predicated region
      $region9: #{tpu_custom_call.1} parent=5 // pred_check
        _
      $region10: #{tpu_custom_call.1} parent=5 // pred_check_branch
        %219 = sbr.rel (%p216) target = $region12
      $region11: #{tpu_custom_call.1} parent=5 // pred_region
        %s220 = ssub.s32 %s19, 1
        // Predicated region
        $region13: #{tpu_custom_call.1} parent=11 // pred_check
          %p221 = pneg %p52
        $region14: #{tpu_custom_call.1} parent=11 // pred_check_branch
          %223 = sbr.rel (%p221) target = $region16
        $region15: #{tpu_custom_call.1} parent=11 // pred_region
          _
        $region16: #{tpu_custom_call.1} parent=11 // pred_fallthru
          _
        // Predicated region
        $region17: #{tpu_custom_call.1} parent=11 // pred_check
          %p224 = pneg %p73
        $region18: #{tpu_custom_call.1} parent=11 // pred_check_branch
          %226 = sbr.rel (%p224) target = $region20
        $region19: #{tpu_custom_call.1} parent=11 // pred_region
          _
        $region20: #{tpu_custom_call.1} parent=11 // pred_fallthru
          _
        // Predicated region
        $region21: #{tpu_custom_call.1} parent=11 // pred_check
          %p227 = pneg %p94
        $region22: #{tpu_custom_call.1} parent=11 // pred_check_branch
          %229 = sbr.rel (%p227) target = $region24
        $region23: #{tpu_custom_call.1} parent=11 // pred_region
          _
        $region24: #{tpu_custom_call.1} parent=11 // pred_fallthru
          _
      $region12: #{tpu_custom_call.1} parent=5 // pred_fallthru
        _
      %p230 = scmp.lt.s32.totalorder %s19, 2
      // Predicated region
      $region25: #{tpu_custom_call.1} parent=5 // pred_check
        %p231 = pneg %p230
      $region26: #{tpu_custom_call.1} parent=5 // pred_check_branch
        %233 = sbr.rel (%p231) target = $region28
      $region27: #{tpu_custom_call.1} parent=5 // pred_region
        // Predicated region
        $region29: #{tpu_custom_call.1} parent=27 // pred_check
          %p234 = pneg %p116
        $region30: #{tpu_custom_call.1} parent=27 // pred_check_branch
          %236 = sbr.rel (%p234) target = $region32
        $region31: #{tpu_custom_call.1} parent=27 // pred_region
          %p237 = scmp.lt.s32.totalorder %s26, 1
          %s238 = scalar_select %p237, %s26, 1
          %p239 = scmp.lt.s32.totalorder %s27, 0
          %s240 = scalar_select %p239, %s27, 0
          %s241 = sadd.s32 %s240, %s238
          %s242 = smul.addr %s241, 4
          %s243 = scalar_lea.vmem %s3, %s242
        $region32: #{tpu_custom_call.1} parent=27 // pred_fallthru
          _
      $region28: #{tpu_custom_call.1} parent=5 // pred_fallthru
        _
      %p244 = scmp.le.s32.totalorder 1, %s19
      %p245 = scmp.lt.s32.totalorder %s19, 3
      %p246 = pnand %p244, %p245
      %p247 = pneg %p246
      // Predicated region
      $region33: #{tpu_custom_call.1} parent=5 // pred_check
        _
      $region34: #{tpu_custom_call.1} parent=5 // pred_check_branch
        %249 = sbr.rel (%p246) target = $region36
      $region35: #{tpu_custom_call.1} parent=5 // pred_region
        %s250 = ssub.s32 %s19, 1
        %p251 = pneg %p52
        %p252 = pneg %p49
        %p253 = pneg %p73
        %p254 = pneg %p70
        %p255 = pneg %p94
        %p256 = pneg %p91
        %p257 = scmp.lt.s32.totalorder %s28, 1
        %s258 = scalar_select %p257, %s28, 1
        %p259 = scmp.lt.s32.totalorder %s29, 0
        %s260 = scalar_select %p259, %s29, 0
        %s261 = sadd.s32 %s260, %s258
        %s262 = smul.addr %s261, 4
        %s263 = scalar_lea.vmem %s3, %s262
        %p264 = pneg %p122
        %p265 = pneg %p119
        %p266 = pneg %p150
        %p267 = pneg %p147
        %s268 = sand.u32 %s137, 1
        %s269 = scalar_lea.sflag [#allocation3], %s268
        %s270 = sand.u32 %s137, 1
        %s271 = smul.addr %s270, 4
        %s272 = scalar_lea.vmem [#allocation2], %s271
        %p273 = pneg %p178
        %p274 = pneg %p175
        %s275 = sand.u32 %s165, 1
        %s276 = scalar_lea.sflag [#allocation5], %s275
        %s277 = sand.u32 %s165, 1
        %s278 = scalar_lea.vmem [#allocation4], %s277
        %p279 = pneg %p206
        %p280 = pneg %p203
        %p281 = scmp.lt.s32.totalorder %s28, 1
        %s282 = scalar_select %p281, %s28, 1
        %p283 = scmp.lt.s32.totalorder %s29, 0
        %s284 = scalar_select %p283, %s29, 0
        %s285 = sadd.s32 %s284, %s282
        %s286 = scalar_lea.vmem %s6, %s285
        %p287 = scmp.lt.s32.totalorder %s28, 1
        %s288 = scalar_select %p287, %s28, 1
        %p289 = scmp.lt.s32.totalorder %s29, 0
        %s290 = scalar_select %p289, %s29, 0
        %s291 = sadd.s32 %s290, %s288
        %s292 = smul.addr %s291, 4
        %s293 = scalar_lea.vmem %s3, %s292
        %p294 = scmp.lt.s32.totalorder %s28, 1
        %s295 = scalar_select %p294, %s28, 1
        %p296 = scmp.lt.s32.totalorder %s29, 0
        %s297 = scalar_select %p296, %s29, 0
        %s298 = sadd.s32 %s297, %s295
        %s299 = scalar_lea.vmem %s6, %s298
        %v300 = vld [vmem:[%s293] sm:$0xf]
        %v301 = vld [vmem:[%s0] sm:$0xff]
        %v302 = vld [vmem:[%s0 + $0x8] sm:$0xff]
        %v303 = vld [vmem:[%s0 + $0x10] sm:$0xff]
        %v304 = vld [vmem:[%s0 + $0x18] sm:$0xff]
        %v305 = vld [vmem:[%s0 + $0x20] sm:$0xff]
        %v306 = vld [vmem:[%s0 + $0x28] sm:$0xff]
        %v307 = vld [vmem:[%s0 + $0x30] sm:$0xff]
        %v308 = vld [vmem:[%s0 + $0x38] sm:$0xff]
        %v309 = vld [vmem:[%s0 + $0x40] sm:$0xff]
        %v310 = vld [vmem:[%s0 + $0x48] sm:$0xff]
        %v311 = vld [vmem:[%s0 + $0x50] sm:$0xff]
        %v312 = vld [vmem:[%s0 + $0x58] sm:$0xff]
        %v313 = vld [vmem:[%s0 + $0x60] sm:$0xff]
        %vm314 = vcmask 31744
        %v316 = vsel %vm314, %v301, 0
        %v319 = vsel %vm314, %v302, 0
        %v322 = vsel %vm314, %v303, 0
        %v325 = vsel %vm314, %v304, 0
        %v328 = vsel %vm314, %v305, 0
        %v331 = vsel %vm314, %v306, 0
        %v334 = vsel %vm314, %v307, 0
        %v337 = vsel %vm314, %v308, 0
        %v340 = vsel %vm314, %v309, 0
        %v343 = vsel %vm314, %v310, 0
        %v346 = vsel %vm314, %v311, 0
        %v349 = vsel %vm314, %v312, 0
        %v352 = vsel %vm314, %v313, 0
        %vm354 = vcmask 1043456
        %v356 = vsel %vm354, %v300, 0
        %358 = vmatprep.subr.mxu0 0.0
        %359 = vmatpush1.msra.mxu0 0.0
        %360 = vmatprep.subr.mxu0 0.0
        %361 = vmatpush1.msra.mxu0 0.0
        %362 = vmatprep.subr.mxu0 0.0
        %363 = vmatpush1.msra.mxu0 0.0
        %364 = vmatprep.subr.mxu0 0.0
        %365 = vmatpush1.msra.mxu0 0.0
        %366 = vmatprep.subr.mxu0 0.0
        %367 = vmatpush1.msra.mxu0 0.0
        %368 = vmatprep.subr.mxu0 0.0
        %369 = vmatpush1.msra.mxu0 0.0
        %370 = vmatprep.subr.mxu0 0.0
        %371 = vmatpush1.msra.mxu0 0.0
        %372 = vmatprep.subr.mxu0 0.0
        %373 = vmatpush1.msra.mxu0 0.0
        %374 = vmatprep.subr.mxu0 0.0
        %375 = vmatpush1.msra.mxu0 0.0
        %376 = vmatprep.subr.mxu0 0.0
        %377 = vmatpush1.msra.mxu0 0.0
        %378 = vmatprep.subr.mxu0 0.0
        %379 = vmatpush1.msra.mxu0 0.0
        %380 = vmatprep.subr.mxu0 0.0
        %381 = vmatpush1.msra.mxu0 0.0
        %382 = vmatprep.subr.mxu0 0.0
        %383 = vmatpush1.msra.mxu0 0.0
        %384 = vmatprep.subr.mxu0 0.0
        %385 = vmatpush1.msra.mxu0 0.0
        %386 = vmatprep.subr.mxu0 0.0
        %387 = vmatpush1.msra.mxu0 0.0
        %388 = vmatprep.subr.mxu0 0.0
        %v389 = vand.u32 %v356, 4294901760
        %390 = vmatpush1.msra.mxu0 %v389
        %391 = vmatprep.subr.mxu0 0.0
        %392 = vmatpush2.msra.mxu0 0.0
        %393 = vmatprep.subr.mxu0 0.0
        %394 = vmatpush2.msra.mxu0 0.0
        %395 = vmatprep.subr.mxu0 0.0
        %396 = vmatpush2.msra.mxu0 0.0
        %397 = vmatprep.subr.mxu0 0.0
        %398 = vmatpush2.msra.mxu0 0.0
        %399 = vmatprep.subr.mxu0 0.0
        %400 = vmatpush2.msra.mxu0 0.0
        %401 = vmatprep.subr.mxu0 0.0
        %402 = vmatpush2.msra.mxu0 0.0
        %403 = vmatprep.subr.mxu0 0.0
        %404 = vmatpush2.msra.mxu0 0.0
        %405 = vmatprep.subr.mxu0 0.0
        %406 = vmatpush2.msra.mxu0 0.0
        %407 = vmatprep.subr.mxu0 0.0
        %408 = vmatpush2.msra.mxu0 0.0
        %409 = vmatprep.subr.mxu0 0.0
        %410 = vmatpush2.msra.mxu0 0.0
        %411 = vmatprep.subr.mxu0 0.0
        %412 = vmatpush2.msra.mxu0 0.0
        %413 = vmatprep.subr.mxu0 0.0
        %414 = vmatpush2.msra.mxu0 0.0
        %415 = vmatprep.subr.mxu0 0.0
        %416 = vmatpush2.msra.mxu0 0.0
        %417 = vmatprep.subr.mxu0 0.0
        %418 = vmatpush2.msra.mxu0 0.0
        %419 = vmatprep.subr.mxu0 0.0
        %420 = vmatpush2.msra.mxu0 0.0
        %421 = vmatprep.subr.mxu0 0.0
        %422 = vmatpush2.msra.mxu0 0.0
        %423 = vmatprep.mubr.f32.mxu0 0.0
        %v424 = vand.u32 %v316, 4294901760
        %v425 = vsub.f32 %v316, %v424
        %v426 = vand.u32 %v425, 4294901760
        %v427 = vsub.f32 %v425, %v426
        %v428 = vand.u32 %v427, 4294901760
        %429 = vmatmul.mubr.f32.gmra.mxu0 %v428
        %v430 = vpop.f32.mrf.mxu0
        %v431 = vadd.f32 0.0, %v430
        %v432 = vpop.f32.mrf.mxu0
        %433 = vmatprep.mubr.f32.mxu0 0.0
        %v434 = vand.u32 %v319, 4294901760
        %v435 = vsub.f32 %v319, %v434
        %v436 = vand.u32 %v435, 4294901760
        %v437 = vsub.f32 %v435, %v436
        %v438 = vand.u32 %v437, 4294901760
        %439 = vmatmul.mubr.f32.gmra.mxu0 %v438
        %v440 = vpop.f32.mrf.mxu0
        %v441 = vadd.f32 0.0, %v440
        %v442 = vpop.f32.mrf.mxu0
        %443 = vmatprep.mubr.f32.mxu0 0.0
        %v444 = vand.u32 %v322, 4294901760
        %v445 = vsub.f32 %v322, %v444
        %v446 = vand.u32 %v445, 4294901760
        %v447 = vsub.f32 %v445, %v446
        %v448 = vand.u32 %v447, 4294901760
        %449 = vmatmul.mubr.f32.gmra.mxu0 %v448
        %v450 = vpop.f32.mrf.mxu0
        %v451 = vadd.f32 0.0, %v450
        %v452 = vpop.f32.mrf.mxu0
        %453 = vmatprep.mubr.f32.mxu0 0.0
        %v454 = vand.u32 %v325, 4294901760
        %v455 = vsub.f32 %v325, %v454
        %v456 = vand.u32 %v455, 4294901760
        %v457 = vsub.f32 %v455, %v456
        %v458 = vand.u32 %v457, 4294901760
        %459 = vmatmul.mubr.f32.gmra.mxu0 %v458
        %v460 = vpop.f32.mrf.mxu0
        %v461 = vadd.f32 0.0, %v460
        %v462 = vpop.f32.mrf.mxu0
        %463 = vmatprep.mubr.f32.mxu0 0.0
        %v464 = vand.u32 %v328, 4294901760
        %v465 = vsub.f32 %v328, %v464
        %v466 = vand.u32 %v465, 4294901760
        %v467 = vsub.f32 %v465, %v466
        %v468 = vand.u32 %v467, 4294901760
        %469 = vmatmul.mubr.f32.gmra.mxu0 %v468
        %v470 = vpop.f32.mrf.mxu0
        %v471 = vadd.f32 0.0, %v470
        %v472 = vpop.f32.mrf.mxu0
        %473 = vmatprep.mubr.f32.mxu0 0.0
        %v474 = vand.u32 %v331, 4294901760
        %v475 = vsub.f32 %v331, %v474
        %v476 = vand.u32 %v475, 4294901760
        %v477 = vsub.f32 %v475, %v476
        %v478 = vand.u32 %v477, 4294901760
        %479 = vmatmul.mubr.f32.gmra.mxu0 %v478
        %v480 = vpop.f32.mrf.mxu0
        %v481 = vadd.f32 0.0, %v480
        %v482 = vpop.f32.mrf.mxu0
        %483 = vmatprep.mubr.f32.mxu0 0.0
        %v484 = vand.u32 %v334, 4294901760
        %v485 = vsub.f32 %v334, %v484
        %v486 = vand.u32 %v485, 4294901760
        %v487 = vsub.f32 %v485, %v486
        %v488 = vand.u32 %v487, 4294901760
        %489 = vmatmul.mubr.f32.gmra.mxu0 %v488
        %v490 = vpop.f32.mrf.mxu0
        %v491 = vadd.f32 0.0, %v490
        %v492 = vpop.f32.mrf.mxu0
        %493 = vmatprep.mubr.f32.mxu0 0.0
        %v494 = vand.u32 %v337, 4294901760
        %v495 = vsub.f32 %v337, %v494
        %v496 = vand.u32 %v495, 4294901760
        %v497 = vsub.f32 %v495, %v496
        %v498 = vand.u32 %v497, 4294901760
        %499 = vmatmul.mubr.f32.gmra.mxu0 %v498
        %v500 = vpop.f32.mrf.mxu0
        %v501 = vadd.f32 0.0, %v500
        %v502 = vpop.f32.mrf.mxu0
        %503 = vmatprep.mubr.f32.mxu0 0.0
        %v504 = vand.u32 %v340, 4294901760
        %v505 = vsub.f32 %v340, %v504
        %v506 = vand.u32 %v505, 4294901760
        %v507 = vsub.f32 %v505, %v506
        %v508 = vand.u32 %v507, 4294901760
        %509 = vmatmul.mubr.f32.gmra.mxu0 %v508
        %v510 = vpop.f32.mrf.mxu0
        %v511 = vadd.f32 0.0, %v510
        %v512 = vpop.f32.mrf.mxu0
        %513 = vmatprep.mubr.f32.mxu0 0.0
        %v514 = vand.u32 %v343, 4294901760
        %v515 = vsub.f32 %v343, %v514
        %v516 = vand.u32 %v515, 4294901760
        %v517 = vsub.f32 %v515, %v516
        %v518 = vand.u32 %v517, 4294901760
        %519 = vmatmul.mubr.f32.gmra.mxu0 %v518
        %v520 = vpop.f32.mrf.mxu0
        %v521 = vadd.f32 0.0, %v520
        %v522 = vpop.f32.mrf.mxu0
        %523 = vmatprep.mubr.f32.mxu0 0.0
        %v524 = vand.u32 %v346, 4294901760
        %v525 = vsub.f32 %v346, %v524
        %v526 = vand.u32 %v525, 4294901760
        %v527 = vsub.f32 %v525, %v526
        %v528 = vand.u32 %v527, 4294901760
        %529 = vmatmul.mubr.f32.gmra.mxu0 %v528
        %v530 = vpop.f32.mrf.mxu0
        %v531 = vadd.f32 0.0, %v530
        %v532 = vpop.f32.mrf.mxu0
        %533 = vmatprep.mubr.f32.mxu0 0.0
        %v534 = vand.u32 %v349, 4294901760
        %v535 = vsub.f32 %v349, %v534
        %v536 = vand.u32 %v535, 4294901760
        %v537 = vsub.f32 %v535, %v536
        %v538 = vand.u32 %v537, 4294901760
        %539 = vmatmul.mubr.f32.gmra.mxu0 %v538
        %v540 = vpop.f32.mrf.mxu0
        %v541 = vadd.f32 0.0, %v540
        %v542 = vpop.f32.mrf.mxu0
        %543 = vmatprep.mubr.f32.mxu0 0.0
        %v544 = vand.u32 %v352, 4294901760
        %v545 = vsub.f32 %v352, %v544
        %v546 = vand.u32 %v545, 4294901760
        %v547 = vsub.f32 %v545, %v546
        %v548 = vand.u32 %v547, 4294901760
        %549 = vmatmul.mubr.f32.gmra.mxu0 %v548
        %v550 = vpop.f32.mrf.mxu0
        %v551 = vadd.f32 0.0, %v550
        %v552 = vpop.f32.mrf.mxu0
        %553 = vdwg.mxu0
        %554 = vmatprep.subr.mxu0 0.0
        %555 = vmatpush1.msra.mxu0 0.0
        %556 = vmatprep.subr.mxu0 0.0
        %557 = vmatpush1.msra.mxu0 0.0
        %558 = vmatprep.subr.mxu0 0.0
        %559 = vmatpush1.msra.mxu0 0.0
        %560 = vmatprep.subr.mxu0 0.0
        %561 = vmatpush1.msra.mxu0 0.0
        %562 = vmatprep.subr.mxu0 0.0
        %563 = vmatpush1.msra.mxu0 0.0
        %564 = vmatprep.subr.mxu0 0.0
        %565 = vmatpush1.msra.mxu0 0.0
        %566 = vmatprep.subr.mxu0 0.0
        %567 = vmatpush1.msra.mxu0 0.0
        %568 = vmatprep.subr.mxu0 0.0
        %569 = vmatpush1.msra.mxu0 0.0
        %570 = vmatprep.subr.mxu0 0.0
        %571 = vmatpush1.msra.mxu0 0.0
        %572 = vmatprep.subr.mxu0 0.0
        %573 = vmatpush1.msra.mxu0 0.0
        %574 = vmatprep.subr.mxu0 0.0
        %575 = vmatpush1.msra.mxu0 0.0
        %576 = vmatprep.subr.mxu0 0.0
        %577 = vmatpush1.msra.mxu0 0.0
        %578 = vmatprep.subr.mxu0 0.0
        %579 = vmatpush1.msra.mxu0 0.0
        %580 = vmatprep.subr.mxu0 0.0
        %581 = vmatpush1.msra.mxu0 0.0
        %582 = vmatprep.subr.mxu0 0.0
        %583 = vmatpush1.msra.mxu0 0.0
        %584 = vmatprep.subr.mxu0 0.0
        %v585 = vand.u32 %v356, 4294901760
        %v586 = vsub.f32 %v356, %v585
        %v587 = vand.u32 %v586, 4294901760
        %v588 = vsub.f32 %v586, %v587
        %v589 = vand.u32 %v588, 4294901760
        %590 = vmatpush1.msra.mxu0 %v589
        %591 = vmatprep.subr.mxu0 0.0
        %592 = vmatpush2.msra.mxu0 0.0
        %593 = vmatprep.subr.mxu0 0.0
        %594 = vmatpush2.msra.mxu0 0.0
        %595 = vmatprep.subr.mxu0 0.0
        %596 = vmatpush2.msra.mxu0 0.0
        %597 = vmatprep.subr.mxu0 0.0
        %598 = vmatpush2.msra.mxu0 0.0
        %599 = vmatprep.subr.mxu0 0.0
        %600 = vmatpush2.msra.mxu0 0.0
        %601 = vmatprep.subr.mxu0 0.0
        %602 = vmatpush2.msra.mxu0 0.0
        %603 = vmatprep.subr.mxu0 0.0
        %604 = vmatpush2.msra.mxu0 0.0
        %605 = vmatprep.subr.mxu0 0.0
        %606 = vmatpush2.msra.mxu0 0.0
        %607 = vmatprep.subr.mxu0 0.0
        %608 = vmatpush2.msra.mxu0 0.0
        %609 = vmatprep.subr.mxu0 0.0
        %610 = vmatpush2.msra.mxu0 0.0
        %611 = vmatprep.subr.mxu0 0.0
        %612 = vmatpush2.msra.mxu0 0.0
        %613 = vmatprep.subr.mxu0 0.0
        %614 = vmatpush2.msra.mxu0 0.0
        %615 = vmatprep.subr.mxu0 0.0
        %616 = vmatpush2.msra.mxu0 0.0
        %617 = vmatprep.subr.mxu0 0.0
        %618 = vmatpush2.msra.mxu0 0.0
        %619 = vmatprep.subr.mxu0 0.0
        %620 = vmatpush2.msra.mxu0 0.0
        %621 = vmatprep.subr.mxu0 0.0
        %622 = vmatpush2.msra.mxu0 0.0
        %623 = vmatprep.mubr.f32.mxu0 0.0
        %v624 = vand.u32 %v316, 4294901760
        %625 = vmatmul.mubr.f32.gmra.mxu0 %v624
        %v626 = vpop.f32.mrf.mxu0
        %v627 = vadd.f32 %v431, %v626
        %v628 = vpop.f32.mrf.mxu0
        %629 = vmatprep.mubr.f32.mxu0 0.0
        %v630 = vand.u32 %v319, 4294901760
        %631 = vmatmul.mubr.f32.gmra.mxu0 %v630
        %v632 = vpop.f32.mrf.mxu0
        %v633 = vadd.f32 %v441, %v632
        %v634 = vpop.f32.mrf.mxu0
        %635 = vmatprep.mubr.f32.mxu0 0.0
        %v636 = vand.u32 %v322, 4294901760
        %637 = vmatmul.mubr.f32.gmra.mxu0 %v636
        %v638 = vpop.f32.mrf.mxu0
        %v639 = vadd.f32 %v451, %v638
        %v640 = vpop.f32.mrf.mxu0
        %641 = vmatprep.mubr.f32.mxu0 0.0
        %v642 = vand.u32 %v325, 4294901760
        %643 = vmatmul.mubr.f32.gmra.mxu0 %v642
        %v644 = vpop.f32.mrf.mxu0
        %v645 = vadd.f32 %v461, %v644
        %v646 = vpop.f32.mrf.mxu0
        %647 = vmatprep.mubr.f32.mxu0 0.0
        %v648 = vand.u32 %v328, 4294901760
        %649 = vmatmul.mubr.f32.gmra.mxu0 %v648
        %v650 = vpop.f32.mrf.mxu0
        %v651 = vadd.f32 %v471, %v650
        %v652 = vpop.f32.mrf.mxu0
        %653 = vmatprep.mubr.f32.mxu0 0.0
        %v654 = vand.u32 %v331, 4294901760
        %655 = vmatmul.mubr.f32.gmra.mxu0 %v654
        %v656 = vpop.f32.mrf.mxu0
        %v657 = vadd.f32 %v481, %v656
        %v658 = vpop.f32.mrf.mxu0
        %659 = vmatprep.mubr.f32.mxu0 0.0
        %v660 = vand.u32 %v334, 4294901760
        %661 = vmatmul.mubr.f32.gmra.mxu0 %v660
        %v662 = vpop.f32.mrf.mxu0
        %v663 = vadd.f32 %v491, %v662
        %v664 = vpop.f32.mrf.mxu0
        %665 = vmatprep.mubr.f32.mxu0 0.0
        %v666 = vand.u32 %v337, 4294901760
        %667 = vmatmul.mubr.f32.gmra.mxu0 %v666
        %v668 = vpop.f32.mrf.mxu0
        %v669 = vadd.f32 %v501, %v668
        %v670 = vpop.f32.mrf.mxu0
        %671 = vmatprep.mubr.f32.mxu0 0.0
        %v672 = vand.u32 %v340, 4294901760
        %673 = vmatmul.mubr.f32.gmra.mxu0 %v672
        %v674 = vpop.f32.mrf.mxu0
        %v675 = vadd.f32 %v511, %v674
        %v676 = vpop.f32.mrf.mxu0
        %677 = vmatprep.mubr.f32.mxu0 0.0
        %v678 = vand.u32 %v343, 4294901760
        %679 = vmatmul.mubr.f32.gmra.mxu0 %v678
        %v680 = vpop.f32.mrf.mxu0
        %v681 = vadd.f32 %v521, %v680
        %v682 = vpop.f32.mrf.mxu0
        %683 = vmatprep.mubr.f32.mxu0 0.0
        %v684 = vand.u32 %v346, 4294901760
        %685 = vmatmul.mubr.f32.gmra.mxu0 %v684
        %v686 = vpop.f32.mrf.mxu0
        %v687 = vadd.f32 %v531, %v686
        %v688 = vpop.f32.mrf.mxu0
        %689 = vmatprep.mubr.f32.mxu0 0.0
        %v690 = vand.u32 %v349, 4294901760
        %691 = vmatmul.mubr.f32.gmra.mxu0 %v690
        %v692 = vpop.f32.mrf.mxu0
        %v693 = vadd.f32 %v541, %v692
        %v694 = vpop.f32.mrf.mxu0
        %695 = vmatprep.mubr.f32.mxu0 0.0
        %v696 = vand.u32 %v352, 4294901760
        %697 = vmatmul.mubr.f32.gmra.mxu0 %v696
        %v698 = vpop.f32.mrf.mxu0
        %v699 = vadd.f32 %v551, %v698
        %v700 = vpop.f32.mrf.mxu0
        %701 = vdwg.mxu0
        %702 = vmatprep.subr.mxu0 0.0
        %703 = vmatpush1.msra.mxu0 0.0
        %704 = vmatprep.subr.mxu0 0.0
        %705 = vmatpush1.msra.mxu0 0.0
        %706 = vmatprep.subr.mxu0 0.0
        %707 = vmatpush1.msra.mxu0 0.0
        %708 = vmatprep.subr.mxu0 0.0
        %709 = vmatpush1.msra.mxu0 0.0
        %710 = vmatprep.subr.mxu0 0.0
        %711 = vmatpush1.msra.mxu0 0.0
        %712 = vmatprep.subr.mxu0 0.0
        %713 = vmatpush1.msra.mxu0 0.0
        %714 = vmatprep.subr.mxu0 0.0
        %715 = vmatpush1.msra.mxu0 0.0
        %716 = vmatprep.subr.mxu0 0.0
        %717 = vmatpush1.msra.mxu0 0.0
        %718 = vmatprep.subr.mxu0 0.0
        %719 = vmatpush1.msra.mxu0 0.0
        %720 = vmatprep.subr.mxu0 0.0
        %721 = vmatpush1.msra.mxu0 0.0
        %722 = vmatprep.subr.mxu0 0.0
        %723 = vmatpush1.msra.mxu0 0.0
        %724 = vmatprep.subr.mxu0 0.0
        %725 = vmatpush1.msra.mxu0 0.0
        %726 = vmatprep.subr.mxu0 0.0
        %727 = vmatpush1.msra.mxu0 0.0
        %728 = vmatprep.subr.mxu0 0.0
        %729 = vmatpush1.msra.mxu0 0.0
        %730 = vmatprep.subr.mxu0 0.0
        %731 = vmatpush1.msra.mxu0 0.0
        %732 = vmatprep.subr.mxu0 0.0
        %v733 = vand.u32 %v356, 4294901760
        %v734 = vsub.f32 %v356, %v733
        %735 = vmatpush1.msra.mxu0 %v734
        %736 = vmatprep.subr.mxu0 0.0
        %737 = vmatpush2.msra.mxu0 0.0
        %738 = vmatprep.subr.mxu0 0.0
        %739 = vmatpush2.msra.mxu0 0.0
        %740 = vmatprep.subr.mxu0 0.0
        %741 = vmatpush2.msra.mxu0 0.0
        %742 = vmatprep.subr.mxu0 0.0
        %743 = vmatpush2.msra.mxu0 0.0
        %744 = vmatprep.subr.mxu0 0.0
        %745 = vmatpush2.msra.mxu0 0.0
        %746 = vmatprep.subr.mxu0 0.0
        %747 = vmatpush2.msra.mxu0 0.0
        %748 = vmatprep.subr.mxu0 0.0
        %749 = vmatpush2.msra.mxu0 0.0
        %750 = vmatprep.subr.mxu0 0.0
        %751 = vmatpush2.msra.mxu0 0.0
        %752 = vmatprep.subr.mxu0 0.0
        %753 = vmatpush2.msra.mxu0 0.0
        %754 = vmatprep.subr.mxu0 0.0
        %755 = vmatpush2.msra.mxu0 0.0
        %756 = vmatprep.subr.mxu0 0.0
        %757 = vmatpush2.msra.mxu0 0.0
        %758 = vmatprep.subr.mxu0 0.0
        %759 = vmatpush2.msra.mxu0 0.0
        %760 = vmatprep.subr.mxu0 0.0
        %761 = vmatpush2.msra.mxu0 0.0
        %762 = vmatprep.subr.mxu0 0.0
        %763 = vmatpush2.msra.mxu0 0.0
        %764 = vmatprep.subr.mxu0 0.0
        %765 = vmatpush2.msra.mxu0 0.0
        %766 = vmatprep.subr.mxu0 0.0
        %767 = vmatpush2.msra.mxu0 0.0
        %768 = vmatprep.mubr.f32.mxu0 0.0
        %v769 = vand.u32 %v316, 4294901760
        %v770 = vsub.f32 %v316, %v769
        %771 = vmatmul.mubr.f32.gmra.mxu0 %v770
        %v772 = vpop.f32.mrf.mxu0
        %v773 = vadd.f32 %v627, %v772
        %v774 = vpop.f32.mrf.mxu0
        %775 = vmatprep.mubr.f32.mxu0 0.0
        %v776 = vand.u32 %v319, 4294901760
        %v777 = vsub.f32 %v319, %v776
        %778 = vmatmul.mubr.f32.gmra.mxu0 %v777
        %v779 = vpop.f32.mrf.mxu0
        %v780 = vadd.f32 %v633, %v779
        %v781 = vpop.f32.mrf.mxu0
        %782 = vmatprep.mubr.f32.mxu0 0.0
        %v783 = vand.u32 %v322, 4294901760
        %v784 = vsub.f32 %v322, %v783
        %785 = vmatmul.mubr.f32.gmra.mxu0 %v784
        %v786 = vpop.f32.mrf.mxu0
        %v787 = vadd.f32 %v639, %v786
        %v788 = vpop.f32.mrf.mxu0
        %789 = vmatprep.mubr.f32.mxu0 0.0
        %v790 = vand.u32 %v325, 4294901760
        %v791 = vsub.f32 %v325, %v790
        %792 = vmatmul.mubr.f32.gmra.mxu0 %v791
        %v793 = vpop.f32.mrf.mxu0
        %v794 = vadd.f32 %v645, %v793
        %v795 = vpop.f32.mrf.mxu0
        %796 = vmatprep.mubr.f32.mxu0 0.0
        %v797 = vand.u32 %v328, 4294901760
        %v798 = vsub.f32 %v328, %v797
        %799 = vmatmul.mubr.f32.gmra.mxu0 %v798
        %v800 = vpop.f32.mrf.mxu0
        %v801 = vadd.f32 %v651, %v800
        %v802 = vpop.f32.mrf.mxu0
        %803 = vmatprep.mubr.f32.mxu0 0.0
        %v804 = vand.u32 %v331, 4294901760
        %v805 = vsub.f32 %v331, %v804
        %806 = vmatmul.mubr.f32.gmra.mxu0 %v805
        %v807 = vpop.f32.mrf.mxu0
        %v808 = vadd.f32 %v657, %v807
        %v809 = vpop.f32.mrf.mxu0
        %810 = vmatprep.mubr.f32.mxu0 0.0
        %v811 = vand.u32 %v334, 4294901760
        %v812 = vsub.f32 %v334, %v811
        %813 = vmatmul.mubr.f32.gmra.mxu0 %v812
        %v814 = vpop.f32.mrf.mxu0
        %v815 = vadd.f32 %v663, %v814
        %v816 = vpop.f32.mrf.mxu0
        %817 = vmatprep.mubr.f32.mxu0 0.0
        %v818 = vand.u32 %v337, 4294901760
        %v819 = vsub.f32 %v337, %v818
        %820 = vmatmul.mubr.f32.gmra.mxu0 %v819
        %v821 = vpop.f32.mrf.mxu0
        %v822 = vadd.f32 %v669, %v821
        %v823 = vpop.f32.mrf.mxu0
        %824 = vmatprep.mubr.f32.mxu0 0.0
        %v825 = vand.u32 %v340, 4294901760
        %v826 = vsub.f32 %v340, %v825
        %827 = vmatmul.mubr.f32.gmra.mxu0 %v826
        %v828 = vpop.f32.mrf.mxu0
        %v829 = vadd.f32 %v675, %v828
        %v830 = vpop.f32.mrf.mxu0
        %831 = vmatprep.mubr.f32.mxu0 0.0
        %v832 = vand.u32 %v343, 4294901760
        %v833 = vsub.f32 %v343, %v832
        %834 = vmatmul.mubr.f32.gmra.mxu0 %v833
        %v835 = vpop.f32.mrf.mxu0
        %v836 = vadd.f32 %v681, %v835
        %v837 = vpop.f32.mrf.mxu0
        %838 = vmatprep.mubr.f32.mxu0 0.0
        %v839 = vand.u32 %v346, 4294901760
        %v840 = vsub.f32 %v346, %v839
        %841 = vmatmul.mubr.f32.gmra.mxu0 %v840
        %v842 = vpop.f32.mrf.mxu0
        %v843 = vadd.f32 %v687, %v842
        %v844 = vpop.f32.mrf.mxu0
        %845 = vmatprep.mubr.f32.mxu0 0.0
        %v846 = vand.u32 %v349, 4294901760
        %v847 = vsub.f32 %v349, %v846
        %848 = vmatmul.mubr.f32.gmra.mxu0 %v847
        %v849 = vpop.f32.mrf.mxu0
        %v850 = vadd.f32 %v693, %v849
        %v851 = vpop.f32.mrf.mxu0
        %852 = vmatprep.mubr.f32.mxu0 0.0
        %v853 = vand.u32 %v352, 4294901760
        %v854 = vsub.f32 %v352, %v853
        %855 = vmatmul.mubr.f32.gmra.mxu0 %v854
        %v856 = vpop.f32.mrf.mxu0
        %v857 = vadd.f32 %v699, %v856
        %v858 = vpop.f32.mrf.mxu0
        %859 = vdwg.mxu0
        %860 = vmatprep.subr.mxu0 0.0
        %861 = vmatpush1.msra.mxu0 0.0
        %862 = vmatprep.subr.mxu0 0.0
        %863 = vmatpush1.msra.mxu0 0.0
        %864 = vmatprep.subr.mxu0 0.0
        %865 = vmatpush1.msra.mxu0 0.0
        %866 = vmatprep.subr.mxu0 0.0
        %867 = vmatpush1.msra.mxu0 0.0
        %868 = vmatprep.subr.mxu0 0.0
        %869 = vmatpush1.msra.mxu0 0.0
        %870 = vmatprep.subr.mxu0 0.0
        %871 = vmatpush1.msra.mxu0 0.0
        %872 = vmatprep.subr.mxu0 0.0
        %873 = vmatpush1.msra.mxu0 0.0
        %874 = vmatprep.subr.mxu0 0.0
        %875 = vmatpush1.msra.mxu0 0.0
        %876 = vmatprep.subr.mxu0 0.0
        %877 = vmatpush1.msra.mxu0 0.0
        %878 = vmatprep.subr.mxu0 0.0
        %879 = vmatpush1.msra.mxu0 0.0
        %880 = vmatprep.subr.mxu0 0.0
        %881 = vmatpush1.msra.mxu0 0.0
        %882 = vmatprep.subr.mxu0 0.0
        %883 = vmatpush1.msra.mxu0 0.0
        %884 = vmatprep.subr.mxu0 0.0
        %885 = vmatpush1.msra.mxu0 0.0
        %886 = vmatprep.subr.mxu0 0.0
        %887 = vmatpush1.msra.mxu0 0.0
        %888 = vmatprep.subr.mxu0 0.0
        %889 = vmatpush1.msra.mxu0 0.0
        %890 = vmatprep.subr.mxu0 0.0
        %v891 = vand.u32 %v356, 4294901760
        %892 = vmatpush1.msra.mxu0 %v891
        %893 = vmatprep.subr.mxu0 0.0
        %894 = vmatpush2.msra.mxu0 0.0
        %895 = vmatprep.subr.mxu0 0.0
        %896 = vmatpush2.msra.mxu0 0.0
        %897 = vmatprep.subr.mxu0 0.0
        %898 = vmatpush2.msra.mxu0 0.0
        %899 = vmatprep.subr.mxu0 0.0
        %900 = vmatpush2.msra.mxu0 0.0
        %901 = vmatprep.subr.mxu0 0.0
        %902 = vmatpush2.msra.mxu0 0.0
        %903 = vmatprep.subr.mxu0 0.0
        %904 = vmatpush2.msra.mxu0 0.0
        %905 = vmatprep.subr.mxu0 0.0
        %906 = vmatpush2.msra.mxu0 0.0
        %907 = vmatprep.subr.mxu0 0.0
        %908 = vmatpush2.msra.mxu0 0.0
        %909 = vmatprep.subr.mxu0 0.0
        %910 = vmatpush2.msra.mxu0 0.0
        %911 = vmatprep.subr.mxu0 0.0
        %912 = vmatpush2.msra.mxu0 0.0
        %913 = vmatprep.subr.mxu0 0.0
        %914 = vmatpush2.msra.mxu0 0.0
        %915 = vmatprep.subr.mxu0 0.0
        %916 = vmatpush2.msra.mxu0 0.0
        %917 = vmatprep.subr.mxu0 0.0
        %918 = vmatpush2.msra.mxu0 0.0
        %919 = vmatprep.subr.mxu0 0.0
        %920 = vmatpush2.msra.mxu0 0.0
        %921 = vmatprep.subr.mxu0 0.0
        %922 = vmatpush2.msra.mxu0 0.0
        %923 = vmatprep.subr.mxu0 0.0
        %924 = vmatpush2.msra.mxu0 0.0
        %925 = vmatprep.mubr.f32.mxu0 0.0
        %v926 = vand.u32 %v316, 4294901760
        %v927 = vsub.f32 %v316, %v926
        %v928 = vand.u32 %v927, 4294901760
        %929 = vmatmul.mubr.f32.gmra.mxu0 %v928
        %v930 = vpop.f32.mrf.mxu0
        %v931 = vadd.f32 %v773, %v930
        %v932 = vpop.f32.mrf.mxu0
        %933 = vmatprep.mubr.f32.mxu0 0.0
        %v934 = vand.u32 %v319, 4294901760
        %v935 = vsub.f32 %v319, %v934
        %v936 = vand.u32 %v935, 4294901760
        %937 = vmatmul.mubr.f32.gmra.mxu0 %v936
        %v938 = vpop.f32.mrf.mxu0
        %v939 = vadd.f32 %v780, %v938
        %v940 = vpop.f32.mrf.mxu0
        %941 = vmatprep.mubr.f32.mxu0 0.0
        %v942 = vand.u32 %v322, 4294901760
        %v943 = vsub.f32 %v322, %v942
        %v944 = vand.u32 %v943, 4294901760
        %945 = vmatmul.mubr.f32.gmra.mxu0 %v944
        %v946 = vpop.f32.mrf.mxu0
        %v947 = vadd.f32 %v787, %v946
        %v948 = vpop.f32.mrf.mxu0
        %949 = vmatprep.mubr.f32.mxu0 0.0
        %v950 = vand.u32 %v325, 4294901760
        %v951 = vsub.f32 %v325, %v950
        %v952 = vand.u32 %v951, 4294901760
        %953 = vmatmul.mubr.f32.gmra.mxu0 %v952
        %v954 = vpop.f32.mrf.mxu0
        %v955 = vadd.f32 %v794, %v954
        %v956 = vpop.f32.mrf.mxu0
        %957 = vmatprep.mubr.f32.mxu0 0.0
        %v958 = vand.u32 %v328, 4294901760
        %v959 = vsub.f32 %v328, %v958
        %v960 = vand.u32 %v959, 4294901760
        %961 = vmatmul.mubr.f32.gmra.mxu0 %v960
        %v962 = vpop.f32.mrf.mxu0
        %v963 = vadd.f32 %v801, %v962
        %v964 = vpop.f32.mrf.mxu0
        %965 = vmatprep.mubr.f32.mxu0 0.0
        %v966 = vand.u32 %v331, 4294901760
        %v967 = vsub.f32 %v331, %v966
        %v968 = vand.u32 %v967, 4294901760
        %969 = vmatmul.mubr.f32.gmra.mxu0 %v968
        %v970 = vpop.f32.mrf.mxu0
        %v971 = vadd.f32 %v808, %v970
        %v972 = vpop.f32.mrf.mxu0
        %973 = vmatprep.mubr.f32.mxu0 0.0
        %v974 = vand.u32 %v334, 4294901760
        %v975 = vsub.f32 %v334, %v974
        %v976 = vand.u32 %v975, 4294901760
        %977 = vmatmul.mubr.f32.gmra.mxu0 %v976
        %v978 = vpop.f32.mrf.mxu0
        %v979 = vadd.f32 %v815, %v978
        %v980 = vpop.f32.mrf.mxu0
        %981 = vmatprep.mubr.f32.mxu0 0.0
        %v982 = vand.u32 %v337, 4294901760
        %v983 = vsub.f32 %v337, %v982
        %v984 = vand.u32 %v983, 4294901760
        %985 = vmatmul.mubr.f32.gmra.mxu0 %v984
        %v986 = vpop.f32.mrf.mxu0
        %v987 = vadd.f32 %v822, %v986
        %v988 = vpop.f32.mrf.mxu0
        %989 = vmatprep.mubr.f32.mxu0 0.0
        %v990 = vand.u32 %v340, 4294901760
        %v991 = vsub.f32 %v340, %v990
        %v992 = vand.u32 %v991, 4294901760
        %993 = vmatmul.mubr.f32.gmra.mxu0 %v992
        %v994 = vpop.f32.mrf.mxu0
        %v995 = vadd.f32 %v829, %v994
        %v996 = vpop.f32.mrf.mxu0
        %997 = vmatprep.mubr.f32.mxu0 0.0
        %v998 = vand.u32 %v343, 4294901760
        %v999 = vsub.f32 %v343, %v998
        %v1000 = vand.u32 %v999, 4294901760
        %1001 = vmatmul.mubr.f32.gmra.mxu0 %v1000
        %v1002 = vpop.f32.mrf.mxu0
        %v1003 = vadd.f32 %v836, %v1002
        %v1004 = vpop.f32.mrf.mxu0
        %1005 = vmatprep.mubr.f32.mxu0 0.0
        %v1006 = vand.u32 %v346, 4294901760
        %v1007 = vsub.f32 %v346, %v1006
        %v1008 = vand.u32 %v1007, 4294901760
        %1009 = vmatmul.mubr.f32.gmra.mxu0 %v1008
        %v1010 = vpop.f32.mrf.mxu0
        %v1011 = vadd.f32 %v843, %v1010
        %v1012 = vpop.f32.mrf.mxu0
        %1013 = vmatprep.mubr.f32.mxu0 0.0
        %v1014 = vand.u32 %v349, 4294901760
        %v1015 = vsub.f32 %v349, %v1014
        %v1016 = vand.u32 %v1015, 4294901760
        %1017 = vmatmul.mubr.f32.gmra.mxu0 %v1016
        %v1018 = vpop.f32.mrf.mxu0
        %v1019 = vadd.f32 %v850, %v1018
        %v1020 = vpop.f32.mrf.mxu0
        %1021 = vmatprep.mubr.f32.mxu0 0.0
        %v1022 = vand.u32 %v352, 4294901760
        %v1023 = vsub.f32 %v352, %v1022
        %v1024 = vand.u32 %v1023, 4294901760
        %1025 = vmatmul.mubr.f32.gmra.mxu0 %v1024
        %v1026 = vpop.f32.mrf.mxu0
        %v1027 = vadd.f32 %v857, %v1026
        %v1028 = vpop.f32.mrf.mxu0
        %1029 = vdwg.mxu0
        %1030 = vmatprep.subr.mxu0 0.0
        %1031 = vmatpush1.msra.mxu0 0.0
        %1032 = vmatprep.subr.mxu0 0.0
        %1033 = vmatpush1.msra.mxu0 0.0
        %1034 = vmatprep.subr.mxu0 0.0
        %1035 = vmatpush1.msra.mxu0 0.0
        %1036 = vmatprep.subr.mxu0 0.0
        %1037 = vmatpush1.msra.mxu0 0.0
        %1038 = vmatprep.subr.mxu0 0.0
        %1039 = vmatpush1.msra.mxu0 0.0
        %1040 = vmatprep.subr.mxu0 0.0
        %1041 = vmatpush1.msra.mxu0 0.0
        %1042 = vmatprep.subr.mxu0 0.0
        %1043 = vmatpush1.msra.mxu0 0.0
        %1044 = vmatprep.subr.mxu0 0.0
        %1045 = vmatpush1.msra.mxu0 0.0
        %1046 = vmatprep.subr.mxu0 0.0
        %1047 = vmatpush1.msra.mxu0 0.0
        %1048 = vmatprep.subr.mxu0 0.0
        %1049 = vmatpush1.msra.mxu0 0.0
        %1050 = vmatprep.subr.mxu0 0.0
        %1051 = vmatpush1.msra.mxu0 0.0
        %1052 = vmatprep.subr.mxu0 0.0
        %1053 = vmatpush1.msra.mxu0 0.0
        %1054 = vmatprep.subr.mxu0 0.0
        %1055 = vmatpush1.msra.mxu0 0.0
        %1056 = vmatprep.subr.mxu0 0.0
        %1057 = vmatpush1.msra.mxu0 0.0
        %1058 = vmatprep.subr.mxu0 0.0
        %1059 = vmatpush1.msra.mxu0 0.0
        %1060 = vmatprep.subr.mxu0 0.0
        %v1061 = vand.u32 %v356, 4294901760
        %v1062 = vsub.f32 %v356, %v1061
        %v1063 = vand.u32 %v1062, 4294901760
        %1064 = vmatpush1.msra.mxu0 %v1063
        %1065 = vmatprep.subr.mxu0 0.0
        %1066 = vmatpush2.msra.mxu0 0.0
        %1067 = vmatprep.subr.mxu0 0.0
        %1068 = vmatpush2.msra.mxu0 0.0
        %1069 = vmatprep.subr.mxu0 0.0
        %1070 = vmatpush2.msra.mxu0 0.0
        %1071 = vmatprep.subr.mxu0 0.0
        %1072 = vmatpush2.msra.mxu0 0.0
        %1073 = vmatprep.subr.mxu0 0.0
        %1074 = vmatpush2.msra.mxu0 0.0
        %1075 = vmatprep.subr.mxu0 0.0
        %1076 = vmatpush2.msra.mxu0 0.0
        %1077 = vmatprep.subr.mxu0 0.0
        %1078 = vmatpush2.msra.mxu0 0.0
        %1079 = vmatprep.subr.mxu0 0.0
        %1080 = vmatpush2.msra.mxu0 0.0
        %1081 = vmatprep.subr.mxu0 0.0
        %1082 = vmatpush2.msra.mxu0 0.0
        %1083 = vmatprep.subr.mxu0 0.0
        %1084 = vmatpush2.msra.mxu0 0.0
        %1085 = vmatprep.subr.mxu0 0.0
        %1086 = vmatpush2.msra.mxu0 0.0
        %1087 = vmatprep.subr.mxu0 0.0
        %1088 = vmatpush2.msra.mxu0 0.0
        %1089 = vmatprep.subr.mxu0 0.0
        %1090 = vmatpush2.msra.mxu0 0.0
        %1091 = vmatprep.subr.mxu0 0.0
        %1092 = vmatpush2.msra.mxu0 0.0
        %1093 = vmatprep.subr.mxu0 0.0
        %1094 = vmatpush2.msra.mxu0 0.0
        %1095 = vmatprep.subr.mxu0 0.0
        %1096 = vmatpush2.msra.mxu0 0.0
        %1097 = vmatprep.mubr.f32.mxu0 0.0
        %v1098 = vand.u32 %v316, 4294901760
        %1099 = vmatmul.mubr.f32.gmra.mxu0 %v1098
        %v1100 = vpop.f32.mrf.mxu0
        %v1101 = vadd.f32 %v931, %v1100
        %v1102 = vpop.f32.mrf.mxu0
        %1103 = vmatprep.mubr.f32.mxu0 0.0
        %v1104 = vand.u32 %v319, 4294901760
        %1105 = vmatmul.mubr.f32.gmra.mxu0 %v1104
        %v1106 = vpop.f32.mrf.mxu0
        %v1107 = vadd.f32 %v939, %v1106
        %v1108 = vpop.f32.mrf.mxu0
        %1109 = vmatprep.mubr.f32.mxu0 0.0
        %v1110 = vand.u32 %v322, 4294901760
        %1111 = vmatmul.mubr.f32.gmra.mxu0 %v1110
        %v1112 = vpop.f32.mrf.mxu0
        %v1113 = vadd.f32 %v947, %v1112
        %v1114 = vpop.f32.mrf.mxu0
        %1115 = vmatprep.mubr.f32.mxu0 0.0
        %v1116 = vand.u32 %v325, 4294901760
        %1117 = vmatmul.mubr.f32.gmra.mxu0 %v1116
        %v1118 = vpop.f32.mrf.mxu0
        %v1119 = vadd.f32 %v955, %v1118
        %v1120 = vpop.f32.mrf.mxu0
        %1121 = vmatprep.mubr.f32.mxu0 0.0
        %v1122 = vand.u32 %v328, 4294901760
        %1123 = vmatmul.mubr.f32.gmra.mxu0 %v1122
        %v1124 = vpop.f32.mrf.mxu0
        %v1125 = vadd.f32 %v963, %v1124
        %v1126 = vpop.f32.mrf.mxu0
        %1127 = vmatprep.mubr.f32.mxu0 0.0
        %v1128 = vand.u32 %v331, 4294901760
        %1129 = vmatmul.mubr.f32.gmra.mxu0 %v1128
        %v1130 = vpop.f32.mrf.mxu0
        %v1131 = vadd.f32 %v971, %v1130
        %v1132 = vpop.f32.mrf.mxu0
        %1133 = vmatprep.mubr.f32.mxu0 0.0
        %v1134 = vand.u32 %v334, 4294901760
        %1135 = vmatmul.mubr.f32.gmra.mxu0 %v1134
        %v1136 = vpop.f32.mrf.mxu0
        %v1137 = vadd.f32 %v979, %v1136
        %v1138 = vpop.f32.mrf.mxu0
        %1139 = vmatprep.mubr.f32.mxu0 0.0
        %v1140 = vand.u32 %v337, 4294901760
        %1141 = vmatmul.mubr.f32.gmra.mxu0 %v1140
        %v1142 = vpop.f32.mrf.mxu0
        %v1143 = vadd.f32 %v987, %v1142
        %v1144 = vpop.f32.mrf.mxu0
        %1145 = vmatprep.mubr.f32.mxu0 0.0
        %v1146 = vand.u32 %v340, 4294901760
        %1147 = vmatmul.mubr.f32.gmra.mxu0 %v1146
        %v1148 = vpop.f32.mrf.mxu0
        %v1149 = vadd.f32 %v995, %v1148
        %v1150 = vpop.f32.mrf.mxu0
        %1151 = vmatprep.mubr.f32.mxu0 0.0
        %v1152 = vand.u32 %v343, 4294901760
        %1153 = vmatmul.mubr.f32.gmra.mxu0 %v1152
        %v1154 = vpop.f32.mrf.mxu0
        %v1155 = vadd.f32 %v1003, %v1154
        %v1156 = vpop.f32.mrf.mxu0
        %1157 = vmatprep.mubr.f32.mxu0 0.0
        %v1158 = vand.u32 %v346, 4294901760
        %1159 = vmatmul.mubr.f32.gmra.mxu0 %v1158
        %v1160 = vpop.f32.mrf.mxu0
        %v1161 = vadd.f32 %v1011, %v1160
        %v1162 = vpop.f32.mrf.mxu0
        %1163 = vmatprep.mubr.f32.mxu0 0.0
        %v1164 = vand.u32 %v349, 4294901760
        %1165 = vmatmul.mubr.f32.gmra.mxu0 %v1164
        %v1166 = vpop.f32.mrf.mxu0
        %v1167 = vadd.f32 %v1019, %v1166
        %v1168 = vpop.f32.mrf.mxu0
        %1169 = vmatprep.mubr.f32.mxu0 0.0
        %v1170 = vand.u32 %v352, 4294901760
        %1171 = vmatmul.mubr.f32.gmra.mxu0 %v1170
        %v1172 = vpop.f32.mrf.mxu0
        %v1173 = vadd.f32 %v1027, %v1172
        %v1174 = vpop.f32.mrf.mxu0
        %1175 = vdwg.mxu0
        %1176 = vmatprep.subr.mxu0 0.0
        %1177 = vmatpush1.msra.mxu0 0.0
        %1178 = vmatprep.subr.mxu0 0.0
        %1179 = vmatpush1.msra.mxu0 0.0
        %1180 = vmatprep.subr.mxu0 0.0
        %1181 = vmatpush1.msra.mxu0 0.0
        %1182 = vmatprep.subr.mxu0 0.0
        %1183 = vmatpush1.msra.mxu0 0.0
        %1184 = vmatprep.subr.mxu0 0.0
        %1185 = vmatpush1.msra.mxu0 0.0
        %1186 = vmatprep.subr.mxu0 0.0
        %1187 = vmatpush1.msra.mxu0 0.0
        %1188 = vmatprep.subr.mxu0 0.0
        %1189 = vmatpush1.msra.mxu0 0.0
        %1190 = vmatprep.subr.mxu0 0.0
        %1191 = vmatpush1.msra.mxu0 0.0
        %1192 = vmatprep.subr.mxu0 0.0
        %1193 = vmatpush1.msra.mxu0 0.0
        %1194 = vmatprep.subr.mxu0 0.0
        %1195 = vmatpush1.msra.mxu0 0.0
        %1196 = vmatprep.subr.mxu0 0.0
        %1197 = vmatpush1.msra.mxu0 0.0
        %1198 = vmatprep.subr.mxu0 0.0
        %1199 = vmatpush1.msra.mxu0 0.0
        %1200 = vmatprep.subr.mxu0 0.0
        %1201 = vmatpush1.msra.mxu0 0.0
        %1202 = vmatprep.subr.mxu0 0.0
        %1203 = vmatpush1.msra.mxu0 0.0
        %1204 = vmatprep.subr.mxu0 0.0
        %1205 = vmatpush1.msra.mxu0 0.0
        %1206 = vmatprep.subr.mxu0 0.0
        %v1207 = vand.u32 %v356, 4294901760
        %1208 = vmatpush1.msra.mxu0 %v1207
        %1209 = vmatprep.subr.mxu0 0.0
        %1210 = vmatpush2.msra.mxu0 0.0
        %1211 = vmatprep.subr.mxu0 0.0
        %1212 = vmatpush2.msra.mxu0 0.0
        %1213 = vmatprep.subr.mxu0 0.0
        %1214 = vmatpush2.msra.mxu0 0.0
        %1215 = vmatprep.subr.mxu0 0.0
        %1216 = vmatpush2.msra.mxu0 0.0
        %1217 = vmatprep.subr.mxu0 0.0
        %1218 = vmatpush2.msra.mxu0 0.0
        %1219 = vmatprep.subr.mxu0 0.0
        %1220 = vmatpush2.msra.mxu0 0.0
        %1221 = vmatprep.subr.mxu0 0.0
        %1222 = vmatpush2.msra.mxu0 0.0
        %1223 = vmatprep.subr.mxu0 0.0
        %1224 = vmatpush2.msra.mxu0 0.0
        %1225 = vmatprep.subr.mxu0 0.0
        %1226 = vmatpush2.msra.mxu0 0.0
        %1227 = vmatprep.subr.mxu0 0.0
        %1228 = vmatpush2.msra.mxu0 0.0
        %1229 = vmatprep.subr.mxu0 0.0
        %1230 = vmatpush2.msra.mxu0 0.0
        %1231 = vmatprep.subr.mxu0 0.0
        %1232 = vmatpush2.msra.mxu0 0.0
        %1233 = vmatprep.subr.mxu0 0.0
        %1234 = vmatpush2.msra.mxu0 0.0
        %1235 = vmatprep.subr.mxu0 0.0
        %1236 = vmatpush2.msra.mxu0 0.0
        %1237 = vmatprep.subr.mxu0 0.0
        %1238 = vmatpush2.msra.mxu0 0.0
        %1239 = vmatprep.subr.mxu0 0.0
        %1240 = vmatpush2.msra.mxu0 0.0
        %1241 = vmatprep.mubr.f32.mxu0 0.0
        %v1242 = vand.u32 %v316, 4294901760
        %1243 = vmatmul.mubr.f32.gmra.mxu0 %v1242
        %v1244 = vpop.f32.mrf.mxu0
        %v1245 = vadd.f32 %v1101, %v1244
        %v1246 = vpop.f32.mrf.mxu0
        %1247 = vmatprep.mubr.f32.mxu0 0.0
        %v1248 = vand.u32 %v319, 4294901760
        %1249 = vmatmul.mubr.f32.gmra.mxu0 %v1248
        %v1250 = vpop.f32.mrf.mxu0
        %v1251 = vadd.f32 %v1107, %v1250
        %v1252 = vpop.f32.mrf.mxu0
        %1253 = vmatprep.mubr.f32.mxu0 0.0
        %v1254 = vand.u32 %v322, 4294901760
        %1255 = vmatmul.mubr.f32.gmra.mxu0 %v1254
        %v1256 = vpop.f32.mrf.mxu0
        %v1257 = vadd.f32 %v1113, %v1256
        %v1258 = vpop.f32.mrf.mxu0
        %1259 = vmatprep.mubr.f32.mxu0 0.0
        %v1260 = vand.u32 %v325, 4294901760
        %1261 = vmatmul.mubr.f32.gmra.mxu0 %v1260
        %v1262 = vpop.f32.mrf.mxu0
        %v1263 = vadd.f32 %v1119, %v1262
        %v1264 = vpop.f32.mrf.mxu0
        %1265 = vmatprep.mubr.f32.mxu0 0.0
        %v1266 = vand.u32 %v328, 4294901760
        %1267 = vmatmul.mubr.f32.gmra.mxu0 %v1266
        %v1268 = vpop.f32.mrf.mxu0
        %v1269 = vadd.f32 %v1125, %v1268
        %v1270 = vpop.f32.mrf.mxu0
        %1271 = vmatprep.mubr.f32.mxu0 0.0
        %v1272 = vand.u32 %v331, 4294901760
        %1273 = vmatmul.mubr.f32.gmra.mxu0 %v1272
        %v1274 = vpop.f32.mrf.mxu0
        %v1275 = vadd.f32 %v1131, %v1274
        %v1276 = vpop.f32.mrf.mxu0
        %1277 = vmatprep.mubr.f32.mxu0 0.0
        %v1278 = vand.u32 %v334, 4294901760
        %1279 = vmatmul.mubr.f32.gmra.mxu0 %v1278
        %v1280 = vpop.f32.mrf.mxu0
        %v1281 = vadd.f32 %v1137, %v1280
        %v1282 = vpop.f32.mrf.mxu0
        %1283 = vmatprep.mubr.f32.mxu0 0.0
        %v1284 = vand.u32 %v337, 4294901760
        %1285 = vmatmul.mubr.f32.gmra.mxu0 %v1284
        %v1286 = vpop.f32.mrf.mxu0
        %v1287 = vadd.f32 %v1143, %v1286
        %v1288 = vpop.f32.mrf.mxu0
        %1289 = vmatprep.mubr.f32.mxu0 0.0
        %v1290 = vand.u32 %v340, 4294901760
        %1291 = vmatmul.mubr.f32.gmra.mxu0 %v1290
        %v1292 = vpop.f32.mrf.mxu0
        %v1293 = vadd.f32 %v1149, %v1292
        %v1294 = vpop.f32.mrf.mxu0
        %1295 = vmatprep.mubr.f32.mxu0 0.0
        %v1296 = vand.u32 %v343, 4294901760
        %1297 = vmatmul.mubr.f32.gmra.mxu0 %v1296
        %v1298 = vpop.f32.mrf.mxu0
        %v1299 = vadd.f32 %v1155, %v1298
        %v1300 = vpop.f32.mrf.mxu0
        %1301 = vmatprep.mubr.f32.mxu0 0.0
        %v1302 = vand.u32 %v346, 4294901760
        %1303 = vmatmul.mubr.f32.gmra.mxu0 %v1302
        %v1304 = vpop.f32.mrf.mxu0
        %v1305 = vadd.f32 %v1161, %v1304
        %v1306 = vpop.f32.mrf.mxu0
        %1307 = vmatprep.mubr.f32.mxu0 0.0
        %v1308 = vand.u32 %v349, 4294901760
        %1309 = vmatmul.mubr.f32.gmra.mxu0 %v1308
        %v1310 = vpop.f32.mrf.mxu0
        %v1311 = vadd.f32 %v1167, %v1310
        %v1312 = vpop.f32.mrf.mxu0
        %1313 = vmatprep.mubr.f32.mxu0 0.0
        %v1314 = vand.u32 %v352, 4294901760
        %1315 = vmatmul.mubr.f32.gmra.mxu0 %v1314
        %v1316 = vpop.f32.mrf.mxu0
        %v1317 = vadd.f32 %v1173, %v1316
        %v1318 = vpop.f32.mrf.mxu0
        %1319 = vdwg.mxu0
        %v1320 = vld [vmem:[%s1] sm:$0xff]
        %v1321 = vld [vmem:[%s1 + $0x8] sm:$0xff]
        %v1322 = vld [vmem:[%s1 + $0x10] sm:$0xff]
        %v1323 = vld [vmem:[%s1 + $0x18] sm:$0xff]
        %v1324 = vld [vmem:[%s1 + $0x20] sm:$0xff]
        %v1325 = vld [vmem:[%s1 + $0x28] sm:$0xff]
        %v1326 = vld [vmem:[%s1 + $0x30] sm:$0xff]
        %v1327 = vld [vmem:[%s1 + $0x38] sm:$0xff]
        %v1328 = vld [vmem:[%s1 + $0x40] sm:$0xff]
        %v1329 = vld [vmem:[%s1 + $0x48] sm:$0xff]
        %v1330 = vld [vmem:[%s1 + $0x50] sm:$0xff]
        %v1331 = vld [vmem:[%s1 + $0x58] sm:$0xff]
        %v1332 = vld [vmem:[%s1 + $0x60] sm:$0xff]
        %v1333 = vlaneseq
        %v1334 = vshrl.u32 %v1333, 7
        %1336 = vset.pattern.permute.xlu0 0
        %1337 = vperm.xlu0 %1336, %v1320
        %v1338 = vpop.permute.xlu0 %1337
        %v1340 = vadd.f32 %v1245, %v1338
        %1342 = vset.pattern.permute.xlu0 0
        %1343 = vperm.xlu0 %1342, %v1321
        %v1344 = vpop.permute.xlu0 %1343
        %v1346 = vadd.f32 %v1251, %v1344
        %vm1347 = vcmp.lt.f32.partialorder %v1346, %v1340
        %v1348 = vsel %vm1347, %v1346, %v1340
        %v1349 = vsel %vm1347, 1, 0
        %1351 = vset.pattern.permute.xlu0 0
        %1352 = vperm.xlu0 %1351, %v1322
        %v1353 = vpop.permute.xlu0 %1352
        %v1355 = vadd.f32 %v1257, %v1353
        %vm1356 = vcmp.lt.f32.partialorder %v1355, %v1348
        %v1357 = vsel %vm1356, %v1355, %v1348
        %v1358 = vsel %vm1356, 2, %v1349
        %1360 = vset.pattern.permute.xlu0 0
        %1361 = vperm.xlu0 %1360, %v1323
        %v1362 = vpop.permute.xlu0 %1361
        %v1364 = vadd.f32 %v1263, %v1362
        %vm1365 = vcmp.lt.f32.partialorder %v1364, %v1357
        %v1366 = vsel %vm1365, %v1364, %v1357
        %v1367 = vsel %vm1365, 3, %v1358
        %1369 = vset.pattern.permute.xlu0 0
        %1370 = vperm.xlu0 %1369, %v1324
        %v1371 = vpop.permute.xlu0 %1370
        %v1373 = vadd.f32 %v1269, %v1371
        %vm1374 = vcmp.lt.f32.partialorder %v1373, %v1366
        %v1375 = vsel %vm1374, %v1373, %v1366
        %v1376 = vsel %vm1374, 4, %v1367
        %1378 = vset.pattern.permute.xlu0 0
        %1379 = vperm.xlu0 %1378, %v1325
        %v1380 = vpop.permute.xlu0 %1379
        %v1382 = vadd.f32 %v1275, %v1380
        %vm1383 = vcmp.lt.f32.partialorder %v1382, %v1375
        %v1384 = vsel %vm1383, %v1382, %v1375
        %v1385 = vsel %vm1383, 5, %v1376
        %1387 = vset.pattern.permute.xlu0 0
        %1388 = vperm.xlu0 %1387, %v1326
        %v1389 = vpop.permute.xlu0 %1388
        %v1391 = vadd.f32 %v1281, %v1389
        %vm1392 = vcmp.lt.f32.partialorder %v1391, %v1384
        %v1393 = vsel %vm1392, %v1391, %v1384
        %v1394 = vsel %vm1392, 6, %v1385
        %1396 = vset.pattern.permute.xlu0 0
        %1397 = vperm.xlu0 %1396, %v1327
        %v1398 = vpop.permute.xlu0 %1397
        %v1400 = vadd.f32 %v1287, %v1398
        %vm1401 = vcmp.lt.f32.partialorder %v1400, %v1393
        %v1402 = vsel %vm1401, %v1400, %v1393
        %v1403 = vsel %vm1401, 7, %v1394
        %1405 = vset.pattern.permute.xlu0 0
        %1406 = vperm.xlu0 %1405, %v1328
        %v1407 = vpop.permute.xlu0 %1406
        %v1409 = vadd.f32 %v1293, %v1407
        %vm1410 = vcmp.lt.f32.partialorder %v1409, %v1402
        %v1411 = vsel %vm1410, %v1409, %v1402
        %v1412 = vsel %vm1410, 8, %v1403
        %1414 = vset.pattern.permute.xlu0 0
        %1415 = vperm.xlu0 %1414, %v1329
        %v1416 = vpop.permute.xlu0 %1415
        %v1418 = vadd.f32 %v1299, %v1416
        %vm1419 = vcmp.lt.f32.partialorder %v1418, %v1411
        %v1420 = vsel %vm1419, %v1418, %v1411
        %v1421 = vsel %vm1419, 9, %v1412
        %1423 = vset.pattern.permute.xlu0 0
        %1424 = vperm.xlu0 %1423, %v1330
        %v1425 = vpop.permute.xlu0 %1424
        %v1427 = vadd.f32 %v1305, %v1425
        %vm1428 = vcmp.lt.f32.partialorder %v1427, %v1420
        %v1429 = vsel %vm1428, %v1427, %v1420
        %v1430 = vsel %vm1428, 10, %v1421
        %1432 = vset.pattern.permute.xlu0 0
        %1433 = vperm.xlu0 %1432, %v1331
        %v1434 = vpop.permute.xlu0 %1433
        %v1436 = vadd.f32 %v1311, %v1434
        %vm1437 = vcmp.lt.f32.partialorder %v1436, %v1429
        %v1438 = vsel %vm1437, %v1436, %v1429
        %v1439 = vsel %vm1437, 11, %v1430
        %1441 = vset.pattern.permute.xlu0 0
        %1442 = vperm.xlu0 %1441, %v1332
        %v1443 = vpop.permute.xlu0 %1442
        %v1445 = vadd.f32 %v1317, %v1443
        %vm1446 = vcmp.lt.f32.partialorder %v1445, %v1438
        %v1447 = vsel %vm1446, %v1445, %v1438
        %v1448 = vsel %vm1446, 12, %v1439
        %vm1449 = vcmask 130048
        %v1450 = vsel %vm1449, %v1447, inf
        %v1451 = vrot.slane %v1450, 4
        %v1452 = vmin.f32 %v1450, %v1451
        %v1453 = vrot.slane %v1452, 2
        %v1454 = vmin.f32 %v1452, %v1453
        %v1455 = vrot.slane %v1454, 1
        %v1456 = vmin.f32 %v1454, %v1455
        %v1457 = vmul.u32 %v1448, 8
        %v1458 = vadd.s32 %v1457, %v1334
        %vm1459 = vcmp.eq.f32.partialorder %v1447, %v1456
        %v1460 = vsel %vm1459, %v1458, 104
        %v1461 = vsel %vm1449, %v1460, 2147483647
        %v1462 = vrot.slane %v1461, 4
        %vm1463 = vcmp.lt.s32.totalorder %v1461, %v1462
        %v1464 = vsel %vm1463, %v1461, %v1462
        %v1465 = vrot.slane %v1464, 2
        %vm1466 = vcmp.lt.s32.totalorder %v1464, %v1465
        %v1467 = vsel %vm1466, %v1464, %v1465
        %v1468 = vrot.slane %v1467, 1
        %vm1469 = vcmp.lt.s32.totalorder %v1467, %v1468
        %v1470 = vsel %vm1469, %v1467, %v1468
        %v1471 = vadd.s32 %v1334, 8
        %v1472 = vadd.s32 %v1334, 16
        %v1473 = vadd.s32 %v1334, 24
        %v1474 = vadd.s32 %v1334, 32
        %v1475 = vadd.s32 %v1334, 40
        %v1476 = vadd.s32 %v1334, 48
        %v1477 = vadd.s32 %v1334, 56
        %v1478 = vadd.s32 %v1334, 64
        %v1479 = vadd.s32 %v1334, 72
        %v1480 = vadd.s32 %v1334, 80
        %v1481 = vadd.s32 %v1334, 88
        %v1482 = vadd.s32 %v1334, 96
        %vm1483 = vcmp.eq.s32.totalorder %v1334, %v1470
        %vm1484 = vcmp.eq.s32.totalorder %v1471, %v1470
        %vm1485 = vcmp.eq.s32.totalorder %v1472, %v1470
        %vm1486 = vcmp.eq.s32.totalorder %v1473, %v1470
        %vm1487 = vcmp.eq.s32.totalorder %v1474, %v1470
        %vm1488 = vcmp.eq.s32.totalorder %v1475, %v1470
        %vm1489 = vcmp.eq.s32.totalorder %v1476, %v1470
        %vm1490 = vcmp.eq.s32.totalorder %v1477, %v1470
        %vm1491 = vcmp.eq.s32.totalorder %v1478, %v1470
        %vm1492 = vcmp.eq.s32.totalorder %v1479, %v1470
        %vm1493 = vcmp.eq.s32.totalorder %v1480, %v1470
        %vm1494 = vcmp.eq.s32.totalorder %v1481, %v1470
        %vm1495 = vcmp.eq.s32.totalorder %v1482, %v1470
        %v1496 = vsel %vm1483, 1, 0
        %v1497 = vsel %vm1484, 1, 0
        %v1498 = vsel %vm1485, 1, 0
        %v1499 = vsel %vm1486, 1, 0
        %v1500 = vsel %vm1487, 1, 0
        %v1501 = vsel %vm1488, 1, 0
        %v1502 = vsel %vm1489, 1, 0
        %v1503 = vsel %vm1490, 1, 0
        %v1504 = vsel %vm1491, 1, 0
        %v1505 = vsel %vm1492, 1, 0
        %v1506 = vsel %vm1493, 1, 0
        %v1507 = vsel %vm1494, 1, 0
        %v1508 = vsel %vm1495, 1, 0
        %v1509 = vcvt.s32.f32 %v1496
        %v1510 = vcvt.s32.f32 %v1497
        %v1511 = vcvt.s32.f32 %v1498
        %v1512 = vcvt.s32.f32 %v1499
        %v1513 = vcvt.s32.f32 %v1500
        %v1514 = vcvt.s32.f32 %v1501
        %v1515 = vcvt.s32.f32 %v1502
        %v1516 = vcvt.s32.f32 %v1503
        %v1517 = vcvt.s32.f32 %v1504
        %v1518 = vcvt.s32.f32 %v1505
        %v1519 = vcvt.s32.f32 %v1506
        %v1520 = vcvt.s32.f32 %v1507
        %v1521 = vcvt.s32.f32 %v1508
        %v1522 = vld [vmem:[%s2] sm:$0xf]
        %vm1523 = vcmask 850944
        %v1525 = vsel %vm1523, %v1522, 0
        %1527 = vmatprep.subr.mxu0 0.0
        %1528 = vmatpush1.msra.mxu0 0.0
        %1529 = vmatprep.subr.mxu0 0.0
        %1530 = vmatpush1.msra.mxu0 0.0
        %1531 = vmatprep.subr.mxu0 0.0
        %1532 = vmatpush1.msra.mxu0 0.0
        %1533 = vmatprep.subr.mxu0 0.0
        %v1534 = vand.u32 %v1521, 4294901760
        %1535 = vmatpush1.msra.mxu0 %v1534
        %1536 = vmatprep.subr.mxu0 0.0
        %v1537 = vand.u32 %v1520, 4294901760
        %1538 = vmatpush1.msra.mxu0 %v1537
        %1539 = vmatprep.subr.mxu0 0.0
        %v1540 = vand.u32 %v1519, 4294901760
        %1541 = vmatpush1.msra.mxu0 %v1540
        %1542 = vmatprep.subr.mxu0 0.0
        %v1543 = vand.u32 %v1518, 4294901760
        %1544 = vmatpush1.msra.mxu0 %v1543
        %1545 = vmatprep.subr.mxu0 0.0
        %v1546 = vand.u32 %v1517, 4294901760
        %1547 = vmatpush1.msra.mxu0 %v1546
        %1548 = vmatprep.subr.mxu0 0.0
        %v1549 = vand.u32 %v1516, 4294901760
        %1550 = vmatpush1.msra.mxu0 %v1549
        %1551 = vmatprep.subr.mxu0 0.0
        %v1552 = vand.u32 %v1515, 4294901760
        %1553 = vmatpush1.msra.mxu0 %v1552
        %1554 = vmatprep.subr.mxu0 0.0
        %v1555 = vand.u32 %v1514, 4294901760
        %1556 = vmatpush1.msra.mxu0 %v1555
        %1557 = vmatprep.subr.mxu0 0.0
        %v1558 = vand.u32 %v1513, 4294901760
        %1559 = vmatpush1.msra.mxu0 %v1558
        %1560 = vmatprep.subr.mxu0 0.0
        %v1561 = vand.u32 %v1512, 4294901760
        %1562 = vmatpush1.msra.mxu0 %v1561
        %1563 = vmatprep.subr.mxu0 0.0
        %v1564 = vand.u32 %v1511, 4294901760
        %1565 = vmatpush1.msra.mxu0 %v1564
        %1566 = vmatprep.subr.mxu0 0.0
        %v1567 = vand.u32 %v1510, 4294901760
        %1568 = vmatpush1.msra.mxu0 %v1567
        %1569 = vmatprep.subr.mxu0 0.0
        %v1570 = vand.u32 %v1509, 4294901760
        %1571 = vmatpush1.msra.mxu0 %v1570
        %1572 = vmatprep.subr.mxu0 0.0
        %1573 = vmatpush2.msra.mxu0 0.0
        %1574 = vmatprep.subr.mxu0 0.0
        %1575 = vmatpush2.msra.mxu0 0.0
        %1576 = vmatprep.subr.mxu0 0.0
        %1577 = vmatpush2.msra.mxu0 0.0
        %1578 = vmatprep.subr.mxu0 0.0
        %1579 = vmatpush2.msra.mxu0 0.0
        %1580 = vmatprep.subr.mxu0 0.0
        %1581 = vmatpush2.msra.mxu0 0.0
        %1582 = vmatprep.subr.mxu0 0.0
        %1583 = vmatpush2.msra.mxu0 0.0
        %1584 = vmatprep.subr.mxu0 0.0
        %1585 = vmatpush2.msra.mxu0 0.0
        %1586 = vmatprep.subr.mxu0 0.0
        %1587 = vmatpush2.msra.mxu0 0.0
        %1588 = vmatprep.subr.mxu0 0.0
        %1589 = vmatpush2.msra.mxu0 0.0
        %1590 = vmatprep.subr.mxu0 0.0
        %1591 = vmatpush2.msra.mxu0 0.0
        %1592 = vmatprep.subr.mxu0 0.0
        %1593 = vmatpush2.msra.mxu0 0.0
        %1594 = vmatprep.subr.mxu0 0.0
        %1595 = vmatpush2.msra.mxu0 0.0
        %1596 = vmatprep.subr.mxu0 0.0
        %1597 = vmatpush2.msra.mxu0 0.0
        %1598 = vmatprep.subr.mxu0 0.0
        %1599 = vmatpush2.msra.mxu0 0.0
        %1600 = vmatprep.subr.mxu0 0.0
        %1601 = vmatpush2.msra.mxu0 0.0
        %1602 = vmatprep.subr.mxu0 0.0
        %1603 = vmatpush2.msra.mxu0 0.0
        %1604 = vmatprep.mubr.f32.mxu0 0.0
        %v1605 = vand.u32 %v1525, 4294901760
        %v1606 = vsub.f32 %v1525, %v1605
        %v1607 = vand.u32 %v1606, 4294901760
        %v1608 = vsub.f32 %v1606, %v1607
        %v1609 = vand.u32 %v1608, 4294901760
        %1610 = vmatmul.mubr.f32.gmra.mxu0 %v1609
        %v1611 = vpop.f32.mrf.mxu0
        %v1612 = vadd.f32 0.0, %v1611
        %v1613 = vpop.f32.mrf.mxu0
        %1614 = vdwg.mxu0
        %1615 = vmatprep.subr.mxu0 0.0
        %1616 = vmatpush1.msra.mxu0 0.0
        %1617 = vmatprep.subr.mxu0 0.0
        %1618 = vmatpush1.msra.mxu0 0.0
        %1619 = vmatprep.subr.mxu0 0.0
        %1620 = vmatpush1.msra.mxu0 0.0
        %1621 = vmatprep.subr.mxu0 0.0
        %v1622 = vand.u32 %v1521, 4294901760
        %v1623 = vsub.f32 %v1521, %v1622
        %v1624 = vand.u32 %v1623, 4294901760
        %v1625 = vsub.f32 %v1623, %v1624
        %v1626 = vand.u32 %v1625, 4294901760
        %1627 = vmatpush1.msra.mxu0 %v1626
        %1628 = vmatprep.subr.mxu0 0.0
        %v1629 = vand.u32 %v1520, 4294901760
        %v1630 = vsub.f32 %v1520, %v1629
        %v1631 = vand.u32 %v1630, 4294901760
        %v1632 = vsub.f32 %v1630, %v1631
        %v1633 = vand.u32 %v1632, 4294901760
        %1634 = vmatpush1.msra.mxu0 %v1633
        %1635 = vmatprep.subr.mxu0 0.0
        %v1636 = vand.u32 %v1519, 4294901760
        %v1637 = vsub.f32 %v1519, %v1636
        %v1638 = vand.u32 %v1637, 4294901760
        %v1639 = vsub.f32 %v1637, %v1638
        %v1640 = vand.u32 %v1639, 4294901760
        %1641 = vmatpush1.msra.mxu0 %v1640
        %1642 = vmatprep.subr.mxu0 0.0
        %v1643 = vand.u32 %v1518, 4294901760
        %v1644 = vsub.f32 %v1518, %v1643
        %v1645 = vand.u32 %v1644, 4294901760
        %v1646 = vsub.f32 %v1644, %v1645
        %v1647 = vand.u32 %v1646, 4294901760
        %1648 = vmatpush1.msra.mxu0 %v1647
        %1649 = vmatprep.subr.mxu0 0.0
        %v1650 = vand.u32 %v1517, 4294901760
        %v1651 = vsub.f32 %v1517, %v1650
        %v1652 = vand.u32 %v1651, 4294901760
        %v1653 = vsub.f32 %v1651, %v1652
        %v1654 = vand.u32 %v1653, 4294901760
        %1655 = vmatpush1.msra.mxu0 %v1654
        %1656 = vmatprep.subr.mxu0 0.0
        %v1657 = vand.u32 %v1516, 4294901760
        %v1658 = vsub.f32 %v1516, %v1657
        %v1659 = vand.u32 %v1658, 4294901760
        %v1660 = vsub.f32 %v1658, %v1659
        %v1661 = vand.u32 %v1660, 4294901760
        %1662 = vmatpush1.msra.mxu0 %v1661
        %1663 = vmatprep.subr.mxu0 0.0
        %v1664 = vand.u32 %v1515, 4294901760
        %v1665 = vsub.f32 %v1515, %v1664
        %v1666 = vand.u32 %v1665, 4294901760
        %v1667 = vsub.f32 %v1665, %v1666
        %v1668 = vand.u32 %v1667, 4294901760
        %1669 = vmatpush1.msra.mxu0 %v1668
        %1670 = vmatprep.subr.mxu0 0.0
        %v1671 = vand.u32 %v1514, 4294901760
        %v1672 = vsub.f32 %v1514, %v1671
        %v1673 = vand.u32 %v1672, 4294901760
        %v1674 = vsub.f32 %v1672, %v1673
        %v1675 = vand.u32 %v1674, 4294901760
        %1676 = vmatpush1.msra.mxu0 %v1675
        %1677 = vmatprep.subr.mxu0 0.0
        %v1678 = vand.u32 %v1513, 4294901760
        %v1679 = vsub.f32 %v1513, %v1678
        %v1680 = vand.u32 %v1679, 4294901760
        %v1681 = vsub.f32 %v1679, %v1680
        %v1682 = vand.u32 %v1681, 4294901760
        %1683 = vmatpush1.msra.mxu0 %v1682
        %1684 = vmatprep.subr.mxu0 0.0
        %v1685 = vand.u32 %v1512, 4294901760
        %v1686 = vsub.f32 %v1512, %v1685
        %v1687 = vand.u32 %v1686, 4294901760
        %v1688 = vsub.f32 %v1686, %v1687
        %v1689 = vand.u32 %v1688, 4294901760
        %1690 = vmatpush1.msra.mxu0 %v1689
        %1691 = vmatprep.subr.mxu0 0.0
        %v1692 = vand.u32 %v1511, 4294901760
        %v1693 = vsub.f32 %v1511, %v1692
        %v1694 = vand.u32 %v1693, 4294901760
        %v1695 = vsub.f32 %v1693, %v1694
        %v1696 = vand.u32 %v1695, 4294901760
        %1697 = vmatpush1.msra.mxu0 %v1696
        %1698 = vmatprep.subr.mxu0 0.0
        %v1699 = vand.u32 %v1510, 4294901760
        %v1700 = vsub.f32 %v1510, %v1699
        %v1701 = vand.u32 %v1700, 4294901760
        %v1702 = vsub.f32 %v1700, %v1701
        %v1703 = vand.u32 %v1702, 4294901760
        %1704 = vmatpush1.msra.mxu0 %v1703
        %1705 = vmatprep.subr.mxu0 0.0
        %v1706 = vand.u32 %v1509, 4294901760
        %v1707 = vsub.f32 %v1509, %v1706
        %v1708 = vand.u32 %v1707, 4294901760
        %v1709 = vsub.f32 %v1707, %v1708
        %v1710 = vand.u32 %v1709, 4294901760
        %1711 = vmatpush1.msra.mxu0 %v1710
        %1712 = vmatprep.subr.mxu0 0.0
        %1713 = vmatpush2.msra.mxu0 0.0
        %1714 = vmatprep.subr.mxu0 0.0
        %1715 = vmatpush2.msra.mxu0 0.0
        %1716 = vmatprep.subr.mxu0 0.0
        %1717 = vmatpush2.msra.mxu0 0.0
        %1718 = vmatprep.subr.mxu0 0.0
        %1719 = vmatpush2.msra.mxu0 0.0
        %1720 = vmatprep.subr.mxu0 0.0
        %1721 = vmatpush2.msra.mxu0 0.0
        %1722 = vmatprep.subr.mxu0 0.0
        %1723 = vmatpush2.msra.mxu0 0.0
        %1724 = vmatprep.subr.mxu0 0.0
        %1725 = vmatpush2.msra.mxu0 0.0
        %1726 = vmatprep.subr.mxu0 0.0
        %1727 = vmatpush2.msra.mxu0 0.0
        %1728 = vmatprep.subr.mxu0 0.0
        %1729 = vmatpush2.msra.mxu0 0.0
        %1730 = vmatprep.subr.mxu0 0.0
        %1731 = vmatpush2.msra.mxu0 0.0
        %1732 = vmatprep.subr.mxu0 0.0
        %1733 = vmatpush2.msra.mxu0 0.0
        %1734 = vmatprep.subr.mxu0 0.0
        %1735 = vmatpush2.msra.mxu0 0.0
        %1736 = vmatprep.subr.mxu0 0.0
        %1737 = vmatpush2.msra.mxu0 0.0
        %1738 = vmatprep.subr.mxu0 0.0
        %1739 = vmatpush2.msra.mxu0 0.0
        %1740 = vmatprep.subr.mxu0 0.0
        %1741 = vmatpush2.msra.mxu0 0.0
        %1742 = vmatprep.subr.mxu0 0.0
        %1743 = vmatpush2.msra.mxu0 0.0
        %1744 = vmatprep.mubr.f32.mxu0 0.0
        %v1745 = vand.u32 %v1525, 4294901760
        %1746 = vmatmul.mubr.f32.gmra.mxu0 %v1745
        %v1747 = vpop.f32.mrf.mxu0
        %v1748 = vadd.f32 %v1612, %v1747
        %v1749 = vpop.f32.mrf.mxu0
        %1750 = vdwg.mxu0
        %1751 = vmatprep.subr.mxu0 0.0
        %1752 = vmatpush1.msra.mxu0 0.0
        %1753 = vmatprep.subr.mxu0 0.0
        %1754 = vmatpush1.msra.mxu0 0.0
        %1755 = vmatprep.subr.mxu0 0.0
        %1756 = vmatpush1.msra.mxu0 0.0
        %1757 = vmatprep.subr.mxu0 0.0
        %v1758 = vand.u32 %v1521, 4294901760
        %v1759 = vsub.f32 %v1521, %v1758
        %1760 = vmatpush1.msra.mxu0 %v1759
        %1761 = vmatprep.subr.mxu0 0.0
        %v1762 = vand.u32 %v1520, 4294901760
        %v1763 = vsub.f32 %v1520, %v1762
        %1764 = vmatpush1.msra.mxu0 %v1763
        %1765 = vmatprep.subr.mxu0 0.0
        %v1766 = vand.u32 %v1519, 4294901760
        %v1767 = vsub.f32 %v1519, %v1766
        %1768 = vmatpush1.msra.mxu0 %v1767
        %1769 = vmatprep.subr.mxu0 0.0
        %v1770 = vand.u32 %v1518, 4294901760
        %v1771 = vsub.f32 %v1518, %v1770
        %1772 = vmatpush1.msra.mxu0 %v1771
        %1773 = vmatprep.subr.mxu0 0.0
        %v1774 = vand.u32 %v1517, 4294901760
        %v1775 = vsub.f32 %v1517, %v1774
        %1776 = vmatpush1.msra.mxu0 %v1775
        %1777 = vmatprep.subr.mxu0 0.0
        %v1778 = vand.u32 %v1516, 4294901760
        %v1779 = vsub.f32 %v1516, %v1778
        %1780 = vmatpush1.msra.mxu0 %v1779
        %1781 = vmatprep.subr.mxu0 0.0
        %v1782 = vand.u32 %v1515, 4294901760
        %v1783 = vsub.f32 %v1515, %v1782
        %1784 = vmatpush1.msra.mxu0 %v1783
        %1785 = vmatprep.subr.mxu0 0.0
        %v1786 = vand.u32 %v1514, 4294901760
        %v1787 = vsub.f32 %v1514, %v1786
        %1788 = vmatpush1.msra.mxu0 %v1787
        %1789 = vmatprep.subr.mxu0 0.0
        %v1790 = vand.u32 %v1513, 4294901760
        %v1791 = vsub.f32 %v1513, %v1790
        %1792 = vmatpush1.msra.mxu0 %v1791
        %1793 = vmatprep.subr.mxu0 0.0
        %v1794 = vand.u32 %v1512, 4294901760
        %v1795 = vsub.f32 %v1512, %v1794
        %1796 = vmatpush1.msra.mxu0 %v1795
        %1797 = vmatprep.subr.mxu0 0.0
        %v1798 = vand.u32 %v1511, 4294901760
        %v1799 = vsub.f32 %v1511, %v1798
        %1800 = vmatpush1.msra.mxu0 %v1799
        %1801 = vmatprep.subr.mxu0 0.0
        %v1802 = vand.u32 %v1510, 4294901760
        %v1803 = vsub.f32 %v1510, %v1802
        %1804 = vmatpush1.msra.mxu0 %v1803
        %1805 = vmatprep.subr.mxu0 0.0
        %v1806 = vand.u32 %v1509, 4294901760
        %v1807 = vsub.f32 %v1509, %v1806
        %1808 = vmatpush1.msra.mxu0 %v1807
        %1809 = vmatprep.subr.mxu0 0.0
        %1810 = vmatpush2.msra.mxu0 0.0
        %1811 = vmatprep.subr.mxu0 0.0
        %1812 = vmatpush2.msra.mxu0 0.0
        %1813 = vmatprep.subr.mxu0 0.0
        %1814 = vmatpush2.msra.mxu0 0.0
        %1815 = vmatprep.subr.mxu0 0.0
        %1816 = vmatpush2.msra.mxu0 0.0
        %1817 = vmatprep.subr.mxu0 0.0
        %1818 = vmatpush2.msra.mxu0 0.0
        %1819 = vmatprep.subr.mxu0 0.0
        %1820 = vmatpush2.msra.mxu0 0.0
        %1821 = vmatprep.subr.mxu0 0.0
        %1822 = vmatpush2.msra.mxu0 0.0
        %1823 = vmatprep.subr.mxu0 0.0
        %1824 = vmatpush2.msra.mxu0 0.0
        %1825 = vmatprep.subr.mxu0 0.0
        %1826 = vmatpush2.msra.mxu0 0.0
        %1827 = vmatprep.subr.mxu0 0.0
        %1828 = vmatpush2.msra.mxu0 0.0
        %1829 = vmatprep.subr.mxu0 0.0
        %1830 = vmatpush2.msra.mxu0 0.0
        %1831 = vmatprep.subr.mxu0 0.0
        %1832 = vmatpush2.msra.mxu0 0.0
        %1833 = vmatprep.subr.mxu0 0.0
        %1834 = vmatpush2.msra.mxu0 0.0
        %1835 = vmatprep.subr.mxu0 0.0
        %1836 = vmatpush2.msra.mxu0 0.0
        %1837 = vmatprep.subr.mxu0 0.0
        %1838 = vmatpush2.msra.mxu0 0.0
        %1839 = vmatprep.subr.mxu0 0.0
        %1840 = vmatpush2.msra.mxu0 0.0
        %1841 = vmatprep.mubr.f32.mxu0 0.0
        %v1842 = vand.u32 %v1525, 4294901760
        %v1843 = vsub.f32 %v1525, %v1842
        %1844 = vmatmul.mubr.f32.gmra.mxu0 %v1843
        %v1845 = vpop.f32.mrf.mxu0
        %v1846 = vadd.f32 %v1748, %v1845
        %v1847 = vpop.f32.mrf.mxu0
        %1848 = vdwg.mxu0
        %1849 = vmatprep.subr.mxu0 0.0
        %1850 = vmatpush1.msra.mxu0 0.0
        %1851 = vmatprep.subr.mxu0 0.0
        %1852 = vmatpush1.msra.mxu0 0.0
        %1853 = vmatprep.subr.mxu0 0.0
        %1854 = vmatpush1.msra.mxu0 0.0
        %1855 = vmatprep.subr.mxu0 0.0
        %v1856 = vand.u32 %v1521, 4294901760
        %1857 = vmatpush1.msra.mxu0 %v1856
        %1858 = vmatprep.subr.mxu0 0.0
        %v1859 = vand.u32 %v1520, 4294901760
        %1860 = vmatpush1.msra.mxu0 %v1859
        %1861 = vmatprep.subr.mxu0 0.0
        %v1862 = vand.u32 %v1519, 4294901760
        %1863 = vmatpush1.msra.mxu0 %v1862
        %1864 = vmatprep.subr.mxu0 0.0
        %v1865 = vand.u32 %v1518, 4294901760
        %1866 = vmatpush1.msra.mxu0 %v1865
        %1867 = vmatprep.subr.mxu0 0.0
        %v1868 = vand.u32 %v1517, 4294901760
        %1869 = vmatpush1.msra.mxu0 %v1868
        %1870 = vmatprep.subr.mxu0 0.0
        %v1871 = vand.u32 %v1516, 4294901760
        %1872 = vmatpush1.msra.mxu0 %v1871
        %1873 = vmatprep.subr.mxu0 0.0
        %v1874 = vand.u32 %v1515, 4294901760
        %1875 = vmatpush1.msra.mxu0 %v1874
        %1876 = vmatprep.subr.mxu0 0.0
        %v1877 = vand.u32 %v1514, 4294901760
        %1878 = vmatpush1.msra.mxu0 %v1877
        %1879 = vmatprep.subr.mxu0 0.0
        %v1880 = vand.u32 %v1513, 4294901760
        %1881 = vmatpush1.msra.mxu0 %v1880
        %1882 = vmatprep.subr.mxu0 0.0
        %v1883 = vand.u32 %v1512, 4294901760
        %1884 = vmatpush1.msra.mxu0 %v1883
        %1885 = vmatprep.subr.mxu0 0.0
        %v1886 = vand.u32 %v1511, 4294901760
        %1887 = vmatpush1.msra.mxu0 %v1886
        %1888 = vmatprep.subr.mxu0 0.0
        %v1889 = vand.u32 %v1510, 4294901760
        %1890 = vmatpush1.msra.mxu0 %v1889
        %1891 = vmatprep.subr.mxu0 0.0
        %v1892 = vand.u32 %v1509, 4294901760
        %1893 = vmatpush1.msra.mxu0 %v1892
        %1894 = vmatprep.subr.mxu0 0.0
        %1895 = vmatpush2.msra.mxu0 0.0
        %1896 = vmatprep.subr.mxu0 0.0
        %1897 = vmatpush2.msra.mxu0 0.0
        %1898 = vmatprep.subr.mxu0 0.0
        %1899 = vmatpush2.msra.mxu0 0.0
        %1900 = vmatprep.subr.mxu0 0.0
        %1901 = vmatpush2.msra.mxu0 0.0
        %1902 = vmatprep.subr.mxu0 0.0
        %1903 = vmatpush2.msra.mxu0 0.0
        %1904 = vmatprep.subr.mxu0 0.0
        %1905 = vmatpush2.msra.mxu0 0.0
        %1906 = vmatprep.subr.mxu0 0.0
        %1907 = vmatpush2.msra.mxu0 0.0
        %1908 = vmatprep.subr.mxu0 0.0
        %1909 = vmatpush2.msra.mxu0 0.0
        %1910 = vmatprep.subr.mxu0 0.0
        %1911 = vmatpush2.msra.mxu0 0.0
        %1912 = vmatprep.subr.mxu0 0.0
        %1913 = vmatpush2.msra.mxu0 0.0
        %1914 = vmatprep.subr.mxu0 0.0
        %1915 = vmatpush2.msra.mxu0 0.0
        %1916 = vmatprep.subr.mxu0 0.0
        %1917 = vmatpush2.msra.mxu0 0.0
        %1918 = vmatprep.subr.mxu0 0.0
        %1919 = vmatpush2.msra.mxu0 0.0
        %1920 = vmatprep.subr.mxu0 0.0
        %1921 = vmatpush2.msra.mxu0 0.0
        %1922 = vmatprep.subr.mxu0 0.0
        %1923 = vmatpush2.msra.mxu0 0.0
        %1924 = vmatprep.subr.mxu0 0.0
        %1925 = vmatpush2.msra.mxu0 0.0
        %1926 = vmatprep.mubr.f32.mxu0 0.0
        %v1927 = vand.u32 %v1525, 4294901760
        %v1928 = vsub.f32 %v1525, %v1927
        %v1929 = vand.u32 %v1928, 4294901760
        %1930 = vmatmul.mubr.f32.gmra.mxu0 %v1929
        %v1931 = vpop.f32.mrf.mxu0
        %v1932 = vadd.f32 %v1846, %v1931
        %v1933 = vpop.f32.mrf.mxu0
        %1934 = vdwg.mxu0
        %1935 = vmatprep.subr.mxu0 0.0
        %1936 = vmatpush1.msra.mxu0 0.0
        %1937 = vmatprep.subr.mxu0 0.0
        %1938 = vmatpush1.msra.mxu0 0.0
        %1939 = vmatprep.subr.mxu0 0.0
        %1940 = vmatpush1.msra.mxu0 0.0
        %1941 = vmatprep.subr.mxu0 0.0
        %v1942 = vand.u32 %v1521, 4294901760
        %v1943 = vsub.f32 %v1521, %v1942
        %v1944 = vand.u32 %v1943, 4294901760
        %1945 = vmatpush1.msra.mxu0 %v1944
        %1946 = vmatprep.subr.mxu0 0.0
        %v1947 = vand.u32 %v1520, 4294901760
        %v1948 = vsub.f32 %v1520, %v1947
        %v1949 = vand.u32 %v1948, 4294901760
        %1950 = vmatpush1.msra.mxu0 %v1949
        %1951 = vmatprep.subr.mxu0 0.0
        %v1952 = vand.u32 %v1519, 4294901760
        %v1953 = vsub.f32 %v1519, %v1952
        %v1954 = vand.u32 %v1953, 4294901760
        %1955 = vmatpush1.msra.mxu0 %v1954
        %1956 = vmatprep.subr.mxu0 0.0
        %v1957 = vand.u32 %v1518, 4294901760
        %v1958 = vsub.f32 %v1518, %v1957
        %v1959 = vand.u32 %v1958, 4294901760
        %1960 = vmatpush1.msra.mxu0 %v1959
        %1961 = vmatprep.subr.mxu0 0.0
        %v1962 = vand.u32 %v1517, 4294901760
        %v1963 = vsub.f32 %v1517, %v1962
        %v1964 = vand.u32 %v1963, 4294901760
        %1965 = vmatpush1.msra.mxu0 %v1964
        %1966 = vmatprep.subr.mxu0 0.0
        %v1967 = vand.u32 %v1516, 4294901760
        %v1968 = vsub.f32 %v1516, %v1967
        %v1969 = vand.u32 %v1968, 4294901760
        %1970 = vmatpush1.msra.mxu0 %v1969
        %1971 = vmatprep.subr.mxu0 0.0
        %v1972 = vand.u32 %v1515, 4294901760
        %v1973 = vsub.f32 %v1515, %v1972
        %v1974 = vand.u32 %v1973, 4294901760
        %1975 = vmatpush1.msra.mxu0 %v1974
        %1976 = vmatprep.subr.mxu0 0.0
        %v1977 = vand.u32 %v1514, 4294901760
        %v1978 = vsub.f32 %v1514, %v1977
        %v1979 = vand.u32 %v1978, 4294901760
        %1980 = vmatpush1.msra.mxu0 %v1979
        %1981 = vmatprep.subr.mxu0 0.0
        %v1982 = vand.u32 %v1513, 4294901760
        %v1983 = vsub.f32 %v1513, %v1982
        %v1984 = vand.u32 %v1983, 4294901760
        %1985 = vmatpush1.msra.mxu0 %v1984
        %1986 = vmatprep.subr.mxu0 0.0
        %v1987 = vand.u32 %v1512, 4294901760
        %v1988 = vsub.f32 %v1512, %v1987
        %v1989 = vand.u32 %v1988, 4294901760
        %1990 = vmatpush1.msra.mxu0 %v1989
        %1991 = vmatprep.subr.mxu0 0.0
        %v1992 = vand.u32 %v1511, 4294901760
        %v1993 = vsub.f32 %v1511, %v1992
        %v1994 = vand.u32 %v1993, 4294901760
        %1995 = vmatpush1.msra.mxu0 %v1994
        %1996 = vmatprep.subr.mxu0 0.0
        %v1997 = vand.u32 %v1510, 4294901760
        %v1998 = vsub.f32 %v1510, %v1997
        %v1999 = vand.u32 %v1998, 4294901760
        %2000 = vmatpush1.msra.mxu0 %v1999
        %2001 = vmatprep.subr.mxu0 0.0
        %v2002 = vand.u32 %v1509, 4294901760
        %v2003 = vsub.f32 %v1509, %v2002
        %v2004 = vand.u32 %v2003, 4294901760
        %2005 = vmatpush1.msra.mxu0 %v2004
        %2006 = vmatprep.subr.mxu0 0.0
        %2007 = vmatpush2.msra.mxu0 0.0
        %2008 = vmatprep.subr.mxu0 0.0
        %2009 = vmatpush2.msra.mxu0 0.0
        %2010 = vmatprep.subr.mxu0 0.0
        %2011 = vmatpush2.msra.mxu0 0.0
        %2012 = vmatprep.subr.mxu0 0.0
        %2013 = vmatpush2.msra.mxu0 0.0
        %2014 = vmatprep.subr.mxu0 0.0
        %2015 = vmatpush2.msra.mxu0 0.0
        %2016 = vmatprep.subr.mxu0 0.0
        %2017 = vmatpush2.msra.mxu0 0.0
        %2018 = vmatprep.subr.mxu0 0.0
        %2019 = vmatpush2.msra.mxu0 0.0
        %2020 = vmatprep.subr.mxu0 0.0
        %2021 = vmatpush2.msra.mxu0 0.0
        %2022 = vmatprep.subr.mxu0 0.0
        %2023 = vmatpush2.msra.mxu0 0.0
        %2024 = vmatprep.subr.mxu0 0.0
        %2025 = vmatpush2.msra.mxu0 0.0
        %2026 = vmatprep.subr.mxu0 0.0
        %2027 = vmatpush2.msra.mxu0 0.0
        %2028 = vmatprep.subr.mxu0 0.0
        %2029 = vmatpush2.msra.mxu0 0.0
        %2030 = vmatprep.subr.mxu0 0.0
        %2031 = vmatpush2.msra.mxu0 0.0
        %2032 = vmatprep.subr.mxu0 0.0
        %2033 = vmatpush2.msra.mxu0 0.0
        %2034 = vmatprep.subr.mxu0 0.0
        %2035 = vmatpush2.msra.mxu0 0.0
        %2036 = vmatprep.subr.mxu0 0.0
        %2037 = vmatpush2.msra.mxu0 0.0
        %2038 = vmatprep.mubr.f32.mxu0 0.0
        %v2039 = vand.u32 %v1525, 4294901760
        %2040 = vmatmul.mubr.f32.gmra.mxu0 %v2039
        %v2041 = vpop.f32.mrf.mxu0
        %v2042 = vadd.f32 %v1932, %v2041
        %v2043 = vpop.f32.mrf.mxu0
        %2044 = vdwg.mxu0
        %2045 = vmatprep.subr.mxu0 0.0
        %2046 = vmatpush1.msra.mxu0 0.0
        %2047 = vmatprep.subr.mxu0 0.0
        %2048 = vmatpush1.msra.mxu0 0.0
        %2049 = vmatprep.subr.mxu0 0.0
        %2050 = vmatpush1.msra.mxu0 0.0
        %2051 = vmatprep.subr.mxu0 0.0
        %v2052 = vand.u32 %v1521, 4294901760
        %2053 = vmatpush1.msra.mxu0 %v2052
        %2054 = vmatprep.subr.mxu0 0.0
        %v2055 = vand.u32 %v1520, 4294901760
        %2056 = vmatpush1.msra.mxu0 %v2055
        %2057 = vmatprep.subr.mxu0 0.0
        %v2058 = vand.u32 %v1519, 4294901760
        %2059 = vmatpush1.msra.mxu0 %v2058
        %2060 = vmatprep.subr.mxu0 0.0
        %v2061 = vand.u32 %v1518, 4294901760
        %2062 = vmatpush1.msra.mxu0 %v2061
        %2063 = vmatprep.subr.mxu0 0.0
        %v2064 = vand.u32 %v1517, 4294901760
        %2065 = vmatpush1.msra.mxu0 %v2064
        %2066 = vmatprep.subr.mxu0 0.0
        %v2067 = vand.u32 %v1516, 4294901760
        %2068 = vmatpush1.msra.mxu0 %v2067
        %2069 = vmatprep.subr.mxu0 0.0
        %v2070 = vand.u32 %v1515, 4294901760
        %2071 = vmatpush1.msra.mxu0 %v2070
        %2072 = vmatprep.subr.mxu0 0.0
        %v2073 = vand.u32 %v1514, 4294901760
        %2074 = vmatpush1.msra.mxu0 %v2073
        %2075 = vmatprep.subr.mxu0 0.0
        %v2076 = vand.u32 %v1513, 4294901760
        %2077 = vmatpush1.msra.mxu0 %v2076
        %2078 = vmatprep.subr.mxu0 0.0
        %v2079 = vand.u32 %v1512, 4294901760
        %2080 = vmatpush1.msra.mxu0 %v2079
        %2081 = vmatprep.subr.mxu0 0.0
        %v2082 = vand.u32 %v1511, 4294901760
        %2083 = vmatpush1.msra.mxu0 %v2082
        %2084 = vmatprep.subr.mxu0 0.0
        %v2085 = vand.u32 %v1510, 4294901760
        %2086 = vmatpush1.msra.mxu0 %v2085
        %2087 = vmatprep.subr.mxu0 0.0
        %v2088 = vand.u32 %v1509, 4294901760
        %2089 = vmatpush1.msra.mxu0 %v2088
        %2090 = vmatprep.subr.mxu0 0.0
        %2091 = vmatpush2.msra.mxu0 0.0
        %2092 = vmatprep.subr.mxu0 0.0
        %2093 = vmatpush2.msra.mxu0 0.0
        %2094 = vmatprep.subr.mxu0 0.0
        %2095 = vmatpush2.msra.mxu0 0.0
        %2096 = vmatprep.subr.mxu0 0.0
        %2097 = vmatpush2.msra.mxu0 0.0
        %2098 = vmatprep.subr.mxu0 0.0
        %2099 = vmatpush2.msra.mxu0 0.0
        %2100 = vmatprep.subr.mxu0 0.0
        %2101 = vmatpush2.msra.mxu0 0.0
        %2102 = vmatprep.subr.mxu0 0.0
        %2103 = vmatpush2.msra.mxu0 0.0
        %2104 = vmatprep.subr.mxu0 0.0
        %2105 = vmatpush2.msra.mxu0 0.0
        %2106 = vmatprep.subr.mxu0 0.0
        %2107 = vmatpush2.msra.mxu0 0.0
        %2108 = vmatprep.subr.mxu0 0.0
        %2109 = vmatpush2.msra.mxu0 0.0
        %2110 = vmatprep.subr.mxu0 0.0
        %2111 = vmatpush2.msra.mxu0 0.0
        %2112 = vmatprep.subr.mxu0 0.0
        %2113 = vmatpush2.msra.mxu0 0.0
        %2114 = vmatprep.subr.mxu0 0.0
        %2115 = vmatpush2.msra.mxu0 0.0
        %2116 = vmatprep.subr.mxu0 0.0
        %2117 = vmatpush2.msra.mxu0 0.0
        %2118 = vmatprep.subr.mxu0 0.0
        %2119 = vmatpush2.msra.mxu0 0.0
        %2120 = vmatprep.subr.mxu0 0.0
        %2121 = vmatpush2.msra.mxu0 0.0
        %2122 = vmatprep.mubr.f32.mxu0 0.0
        %v2123 = vand.u32 %v1525, 4294901760
        %2124 = vmatmul.mubr.f32.gmra.mxu0 %v2123
        %v2125 = vpop.f32.mrf.mxu0
        %v2126 = vadd.f32 %v2042, %v2125
        %v2127 = vpop.f32.mrf.mxu0
        %2128 = vdwg.mxu0
        %vm2129 = vcmask 125952
        %2130 = vst.msk [vmem:[%s272] sm:$0xf] %vm2129, %v2126
        %vm2131 = vcmask 122880
        %2132 = vst.msk [vmem:[%s278] sm:$0x1] %vm2131, %v1470
        %v2133 = vsub.f32 %v2126, %v300
        %v2134 = vmul.f32 %v2133, %v2133
        %v2135 = vsel %vm2129, %v2134, 0.0
        %2136 = vadd.xlane.f32.xlu0 %v2135
        %v2137 = vpop.xlane.xlu0 %2136
        %v2138 = vrot.slane %v2137, 4
        %v2139 = vadd.f32 %v2137, %v2138
        %v2140 = vrot.slane %v2139, 2
        %v2141 = vadd.f32 %v2139, %v2140
        %v2142 = vrot.slane %v2141, 1
        %v2143 = vadd.f32 %v2141, %v2142
        %s2144 = vtos %v2143
        %v2145 = vstv %s2144
        %vm2146 = vcmask 0
        %2147 = vst.msk [vmem:[%s299] sm:$0x1] %vm2146, %v2145
        %s2148 = sand.u32 %s137, 1
        %s2149 = scalar_lea.sflag [#allocation3], %s2148
        %s2150 = sand.u32 %s137, 1
        %s2151 = smul.addr %s2150, 4
        %s2152 = scalar_lea.vmem [#allocation2], %s2151
        %s2153 = sand.u32 %s165, 1
        %s2154 = scalar_lea.sflag [#allocation5], %s2153
        %s2155 = sand.u32 %s165, 1
        %s2156 = scalar_lea.vmem [#allocation4], %s2155
        %p2157 = scmp.lt.s32.totalorder %s28, 1
        %s2158 = scalar_select %p2157, %s28, 1
        %p2159 = scmp.lt.s32.totalorder %s29, 0
        %s2160 = scalar_select %p2159, %s29, 0
        %s2161 = sadd.s32 %s2160, %s2158
        %s2162 = scalar_lea.vmem %s6, %s2161
        // Predicated region
        $region37: #{tpu_custom_call.1} parent=35 // pred_check
          %p2163 = pneg %p147
        $region38: #{tpu_custom_call.1} parent=35 // pred_check_branch
          %2165 = sbr.rel (%p2163) target = $region40
        $region39: #{tpu_custom_call.1} parent=35 // pred_region
          %s2167 = ssub.s32 64, 64
          %2168 = vsyncadd %s2149, %s2167
          %s2169 = sadd.s32 %s29, %s28
          %s2170 = smul.addr %s2169, 64
          %s2171 = scalar_lea.hbm %s4, %s2170
          %s2173 = sshll.u32 %s2152, 4
          %s2174 = int_to_ptr.vmem [resolvable:$true] %s2173
          %2176 = dma.vmem_to_hbm [thread:$0]  %s2174, 64, %s2171, %s2149
        $region40: #{tpu_custom_call.1} parent=35 // pred_fallthru
          _
        // Predicated region
        $region41: #{tpu_custom_call.1} parent=35 // pred_check
          %p2177 = pneg %p175
        $region42: #{tpu_custom_call.1} parent=35 // pred_check_branch
          %2179 = sbr.rel (%p2177) target = $region44
        $region43: #{tpu_custom_call.1} parent=35 // pred_region
          %s2181 = ssub.s32 16, 16
          %2182 = vsyncadd %s2154, %s2181
          %s2183 = sadd.s32 %s29, %s28
          %s2184 = smul.addr %s2183, 16
          %s2185 = scalar_lea.hbm %s5, %s2184
          %s2187 = sshll.u32 %s2156, 4
          %s2188 = int_to_ptr.vmem [resolvable:$true] %s2187
          %2190 = dma.vmem_to_hbm [thread:$0]  %s2188, 16, %s2185, %s2154
        $region44: #{tpu_custom_call.1} parent=35 // pred_fallthru
          _
        // Predicated region
        $region45: #{tpu_custom_call.1} parent=35 // pred_check
          %p2191 = pneg %p203
        $region46: #{tpu_custom_call.1} parent=35 // pred_check_branch
          %2193 = sbr.rel (%p2191) target = $region48
        $region47: #{tpu_custom_call.1} parent=35 // pred_region
          _
        $region48: #{tpu_custom_call.1} parent=35 // pred_fallthru
          _
      $region36: #{tpu_custom_call.1} parent=5 // pred_fallthru
        _
      %p2194 = scmp.le.s32.totalorder 2, %s19
      // Predicated region
      $region49: #{tpu_custom_call.1} parent=5 // pred_check
        %p2195 = pneg %p2194
      $region50: #{tpu_custom_call.1} parent=5 // pred_check_branch
        %2197 = sbr.rel (%p2195) target = $region52
      $region51: #{tpu_custom_call.1} parent=5 // pred_region
        %s2198 = ssub.s32 %s19, 2
        // Predicated region
        $region53: #{tpu_custom_call.1} parent=51 // pred_check
          %p2199 = pneg %p153
        $region54: #{tpu_custom_call.1} parent=51 // pred_check_branch
          %2201 = sbr.rel (%p2199) target = $region56
        $region55: #{tpu_custom_call.1} parent=51 // pred_region
          %s2202 = sand.u32 %s138, 1
          %s2203 = scalar_lea.sflag [#allocation3], %s2202
          %s2204 = sand.u32 %s138, 1
          %s2205 = smul.addr %s2204, 4
          %s2206 = scalar_lea.vmem [#allocation2], %s2205
          %2207 = dma.done %s2203, 64
        $region56: #{tpu_custom_call.1} parent=51 // pred_fallthru
          _
        // Predicated region
        $region57: #{tpu_custom_call.1} parent=51 // pred_check
          %p2208 = pneg %p181
        $region58: #{tpu_custom_call.1} parent=51 // pred_check_branch
          %2210 = sbr.rel (%p2208) target = $region60
        $region59: #{tpu_custom_call.1} parent=51 // pred_region
          %s2211 = sand.u32 %s166, 1
          %s2212 = scalar_lea.sflag [#allocation5], %s2211
          %s2213 = sand.u32 %s166, 1
          %s2214 = scalar_lea.vmem [#allocation4], %s2213
          %2215 = dma.done %s2212, 16
        $region60: #{tpu_custom_call.1} parent=51 // pred_fallthru
          _
        // Predicated region
        $region61: #{tpu_custom_call.1} parent=51 // pred_check
          %p2216 = pneg %p209
        $region62: #{tpu_custom_call.1} parent=51 // pred_check_branch
          %2218 = sbr.rel (%p2216) target = $region64
        $region63: #{tpu_custom_call.1} parent=51 // pred_region
          %p2219 = scmp.lt.s32.totalorder %s30, 1
          %s2220 = scalar_select %p2219, %s30, 1
          %p2221 = scmp.lt.s32.totalorder %s31, 0
          %s2222 = scalar_select %p2221, %s31, 0
          %s2223 = sadd.s32 %s2222, %s2220
          %s2224 = scalar_lea.vmem %s6, %s2223
        $region64: #{tpu_custom_call.1} parent=51 // pred_fallthru
          _
      $region52: #{tpu_custom_call.1} parent=5 // pred_fallthru
        _
    $region6: #{tpu_custom_call.1} parent=1 // loop_footer
      %s23 = sadd.s32 1, %s19
    $region7: #{tpu_custom_call.1} parent=1 // loop_footer_branch
      %18 = sbr.rel target = $region3
    $region8: #{tpu_custom_call.1} parent=1 // loop_exit
      _
    %2225 = vsyncpa [#allocation3], 1
    %s2226 = scalar_lea.sflag [#allocation3], 1
    %2227 = vsyncpa %s2226, 1
    %2228 = vsyncpa [#allocation5], 1
    %s2229 = scalar_lea.sflag [#allocation5], 1
    %2230 = vsyncpa %s2229, 1

</llo_original>
